<compile_context>
chip_gen: v5e
topology: v5e:2x2
jax: 0.10.0
libtpu: 0.0.40
codegen_flags: <defaults>
</compile_context>

<pallas_src>
import math

import jax
import jax.numpy as jnp
from jax.experimental import pallas as pl
from jax.experimental.pallas import tpu as pltpu


def _make_kernel(use_mxu_stats):
    """Returns the kernel body; `use_mxu_stats` selects the segmented-LN path."""

    def kernel(x_ref, w_ref, g_ref, b_ref, o_ref):
        # x_ref: (tm, dim)   w_ref: (dim, 2*dim)   g_ref/b_ref: (1, 2*dim)
        # o_ref: (tbh, 2, W, dim)  with tm == tbh * W
        tbh, _, w_sz, dim = o_ref.shape
        half = dim // 2
        c2 = 2 * dim
        tm = x_ref.shape[0]

        # Expand Linear (no bias).  Operands may be bf16 (host-side cast);
        # accumulation is always f32.
        y = jnp.dot(x_ref[...], w_ref[...], preferred_element_type=jnp.float32)

        if use_mxu_stats:
            # Segment sums / sums-of-squares for the 4 (dim//2)-channel chunks
            # of each row via MXU matmuls against constant 0/1 matrices.
            # sel[j, s] = 1 where channel j belongs to chunk s; sel_t is its
            # transpose, built directly from iotas (no in-kernel transpose).
            chan = jax.lax.broadcasted_iota(jnp.int32, (c2, 4), 0) // half
            segi = jax.lax.broadcasted_iota(jnp.int32, (c2, 4), 1)
            sel = (chan == segi).astype(jnp.float32)                  # (c2, 4)
            chan_t = jax.lax.broadcasted_iota(jnp.int32, (4, c2), 1) // half
            segi_t = jax.lax.broadcasted_iota(jnp.int32, (4, c2), 0)
            sel_t = (chan_t == segi_t).astype(jnp.float32)            # (4, c2)

            inv_n = 1.0 / float(half)
            s1 = jnp.dot(y, sel, preferred_element_type=jnp.float32)      # (tm, 4)
            s2 = jnp.dot(y * y, sel, preferred_element_type=jnp.float32)  # (tm, 4)
            mean = s1 * inv_n
            var = jnp.maximum(s2 * inv_n - mean * mean, 0.0)  # biased variance
            rstd = jax.lax.rsqrt(var + 1e-5)
            # Broadcast per-chunk stats back to all channels of the chunk.
            mean_f = jnp.dot(mean, sel_t, preferred_element_type=jnp.float32)
            rstd_f = jnp.dot(rstd, sel_t, preferred_element_type=jnp.float32)
            o = (y - mean_f) * rstd_f                                 # (tm, c2)
        else:
            # Reshape-based per-chunk LayerNorm (fine when half % 128 == 0).
            y4 = y.reshape(tm, 4, half)
            mean = jnp.mean(y4, axis=-1, keepdims=True)
            var = jnp.mean((y4 - mean) ** 2, axis=-1, keepdims=True)
            o = ((y4 - mean) * jax.lax.rsqrt(var + 1e-5)).reshape(tm, c2)

        # gamma/beta were pre-tiled x4 on the host to (1, c2).
        o = o * g_ref[...] + b_ref[...]
        o = o.astype(o_ref.dtype)

        # Fused pixel shuffle: channels [0, dim) of a token feed output row
        # 2h+0, channels [dim, 2*dim) feed output row 2h+1 (each holding the
        # two adjacent W positions back to back).  Just a lane slice plus a
        # free major-axis reshape -- no cross-lane transpose, no extra HBM
        # round trip.
        o_ref[:, 0, :, :] = o[:, :dim].reshape(tbh, w_sz, dim)
        o_ref[:, 1, :, :] = o[:, dim:].reshape(tbh, w_sz, dim)

    return kernel


def _build_call(B, H, W, dim, tbh, out_dtype, vmem_limit_bytes,
                single_buffer_consts, use_mxu_stats):
    c2 = 2 * dim
    BH = B * H
    tm = tbh * W

    def const_spec(shape):
        # Constant index map -> the block is only fetched once; with
        # pipeline_mode=Buffered(1) it is also only held once in VMEM.
        kwargs = {}
        if single_buffer_consts:
            kwargs["pipeline_mode"] = pl.Buffered(1)
        return pl.BlockSpec(shape, lambda i: (0,) * len(shape), **kwargs)

    grid_spec = pltpu.PrefetchScalarGridSpec(
        num_scalar_prefetch=0,
        grid=(pl.cdiv(BH, tbh),),
        in_specs=[
            pl.BlockSpec((tm, dim), lambda i: (i, 0)),   # token rows
            const_spec((dim, c2)),                       # expand weight (resident)
            const_spec((1, c2)),                         # gamma, tiled x4
            const_spec((1, c2)),                         # beta,  tiled x4
        ],
        out_specs=pl.BlockSpec((tbh, 2, W, dim), lambda i: (i, 0, 0, 0)),
    )

    return pl.pallas_call(
        _make_kernel(use_mxu_stats),
        out_shape=jax.ShapeDtypeStruct((BH, 2, W, dim), out_dtype),
        grid_spec=grid_spec,
        compiler_params=pltpu.CompilerParams(
            dimension_semantics=("parallel",),
            vmem_limit_bytes=vmem_limit_bytes,
        ),
    )


def patch_expansion(x, w_t, gamma, beta, *, tokens_per_tile=512,
                    compute_dtype=None, vmem_limit_bytes=48 * 1024 * 1024):
    """PatchExpansion forward.

    x: (B, H, W, dim); w_t: (dim, 2*dim) (transposed PyTorch Linear weight);
    gamma/beta: (dim//2,).  Returns (B, 2H, 2W, dim//2) in x.dtype.

    tokens_per_tile: ~rows of the token matrix per grid step (512 is a good
        f32 default; 512-1024 with compute_dtype=bf16 on v6e; keep ~<=512 on
        v7x's smaller VMEM).
    compute_dtype: optional cast for the matmul operands (e.g. jnp.bfloat16);
        accumulation and LayerNorm stay in f32.
    """
    B, H, W, dim = x.shape
    half = dim // 2
    BH = B * H
    N = BH * W

    out_dtype = x.dtype
    cdt = jnp.dtype(compute_dtype) if compute_dtype is not None else x.dtype

    # Row-tile sizing: whole (b, h) rows so every tile maps to a contiguous
    # output slab.  Keep tm = tbh*W a multiple of the sublane granularity
    # (8 for 4-byte, 16 for 2-byte dtypes) unless the tile covers everything.
    sub = 8 if jnp.dtype(cdt).itemsize >= 4 else 16
    tbh = max(1, tokens_per_tile // max(W, 1))
    step = sub // math.gcd(W, sub)
    tbh = ((tbh + step - 1) // step) * step
    tbh = min(tbh, BH)
    if tbh < BH and (tbh * W) % sub != 0:   # safety net; normally unreachable
        tbh = BH

    x2 = x.reshape(N, dim).astype(cdt)
    w2 = w_t.astype(cdt)
    # gamma/beta apply identically to each of the 4 (dim//2)-channel chunks of
    # a pre-shuffle row; tile them once on the host so the kernel stays 2-D.
    g2 = jnp.tile(gamma.astype(jnp.float32).reshape(1, half), (1, 4))
    b2 = jnp.tile(beta.astype(jnp.float32).reshape(1, half), (1, 4))

    # Preferred configuration first; fall back (feature probe across jax
    # versions) to default double-buffered constants and/or the reshape-based
    # LayerNorm reduction.  All configurations compute identical math.
    out = None
    last_err = None
    for single_buf, mxu_stats in ((True, True), (True, False),
                                  (False, True), (False, False)):
        try:
            call = _build_call(B, H, W, dim, tbh, out_dtype, vmem_limit_bytes,
                               single_buffer_consts=single_buf,
                               use_mxu_stats=mxu_stats)
            out = call(x2, w2, g2, b2)
            break
        except Exception as e:  # noqa: BLE001 - probe, re-raised below if all fail
            last_err = e
            out = None
    if out is None:
        raise last_err

    # (B*H, 2, W, 2*half) is bit-identical (row-major) to (B, 2H, 2W, half):
    # this reshape is a free view, not a transpose.
    return out.reshape(B, 2 * H, 2 * W, half)


def _reference(x, w_t, gamma, beta):
    """Pure-JAX mirror of the PyTorch forward."""
    B, H, W, dim = x.shape
    y = x @ w_t                               # Linear(dim, 2*dim, bias=False)
    C = 2 * dim
    y = y.reshape(B, H, W, 2, 2, C // 4)
    y = jnp.transpose(y, (0, 1, 3, 2, 4, 5))
    y = y.reshape(B, 2 * H, 2 * W, C // 4)
    mean = jnp.mean(y, axis=-1, keepdims=True)
    var = jnp.mean((y - mean) ** 2, axis=-1, keepdims=True)
    return (y - mean) * jax.lax.rsqrt(var + 1e-5) * gamma + beta


if __name__ == "__main__":
    key = jax.random.PRNGKey(0)
    k_x, k_w, k_g, k_b = jax.random.split(key, 4)

    # Small correctness-check shapes only.  Production Swin dims (dim a
    # multiple of 128, tokens_per_tile 256-1024 per TPU generation) are what
    # the wrapper defaults target; perf should be measured there.
    cases = [
        # B, H, W, dim, compute_dtype, tokens_per_tile, atol
        (2, 8, 8, 64, None,         32, 5e-4),  # f32, evenly tiled grid
        (2, 7, 8, 64, None,         32, 5e-4),  # f32, ragged grid (masked tail)
        (2, 8, 8, 64, jnp.bfloat16, 32, 1e-1),  # bf16 MXU operands, f32 LN
    ]
    for (B, H, W, dim, cdt, tpt, atol) in cases:
        half = dim // 2
        x = jax.random.normal(k_x, (B, H, W, dim), dtype=jnp.float32)
        w_t = (jax.random.normal(k_w, (dim, 2 * dim), dtype=jnp.float32)
               * (1.0 / math.sqrt(dim)))
        gamma = 1.0 + 0.1 * jax.random.normal(k_g, (half,), dtype=jnp.float32)
        beta = 0.1 * jax.random.normal(k_b, (half,), dtype=jnp.float32)

        out = patch_expansion(x, w_t, gamma, beta,
                              tokens_per_tile=tpt, compute_dtype=cdt)
        out = jax.block_until_ready(out)
        ref = _reference(x, w_t, gamma, beta)

        assert out.shape == (B, 2 * H, 2 * W, half), out.shape
        err = float(jnp.max(jnp.abs(out - ref)))
        assert err <= atol, (B, H, W, dim, str(cdt), err)

    print("KERNEL_OK")
</pallas_src>

<mosaic_0001>
module attributes {stable_mosaic.version = 11 : i64} {
  func.func @kernel(%arg0: i32, %arg1: memref<32x64xf32, #tpu.memory_space<vmem>>, %arg2: memref<64x128xf32, #tpu.memory_space<vmem>>, %arg3: memref<1x128xf32, #tpu.memory_space<vmem>>, %arg4: memref<1x128xf32, #tpu.memory_space<vmem>>, %arg5: memref<4x2x8x64xf32, #tpu.memory_space<vmem>>) attributes {dimension_semantics = [#tpu.dimension_semantics<parallel>], iteration_bounds = array<i64: 4>, scalar_prefetch = 0 : i64, scratch_operands = 0 : i64, tpu.core_type = #tpu.core_type<tc>, window_params = [{transform_indices = @transform_0, window_bounds = array<i64: 32, 64>}, {pipeline_mode = #tpu.pipeline_mode<synchronous>, transform_indices = @transform_1, window_bounds = array<i64: 64, 128>}, {pipeline_mode = #tpu.pipeline_mode<synchronous>, transform_indices = @transform_2, window_bounds = array<i64: 1, 128>}, {pipeline_mode = #tpu.pipeline_mode<synchronous>, transform_indices = @transform_3, window_bounds = array<i64: 1, 128>}, {transform_indices = @transform_4, window_bounds = array<i64: 4, 2, 8, 64>}]} {
    %c0 = arith.constant 0 : index
    %c0_0 = arith.constant 0 : index
    %0 = vector.load %arg1[%c0, %c0_0] : memref<32x64xf32, #tpu.memory_space<vmem>>, vector<32x64xf32>
    %c0_1 = arith.constant 0 : index
    %c0_2 = arith.constant 0 : index
    %1 = vector.load %arg2[%c0_1, %c0_2] : memref<64x128xf32, #tpu.memory_space<vmem>>, vector<64x128xf32>
    %cst = arith.constant dense<0.000000e+00> : vector<32x128xf32>
    %2 = tpu.matmul %0, %1, %cst {dimension_numbers = #tpu.dot_dimension_numbers<[1], [0], [0], [1], [0, 0, 1, 1], [], []>} : vector<32x64xf32>, vector<64x128xf32>, vector<32x128xf32> -> vector<32x128xf32>
    %3 = vector.shape_cast %2 : vector<32x128xf32> to vector<32x4x32xf32>
    %cst_3 = arith.constant dense<0.000000e+00> : vector<32x4xf32>
    %4 = vector.multi_reduction <add>, %3, %cst_3 [2] : vector<32x4x32xf32> to vector<32x4xf32>
    %5 = vector.shape_cast %4 : vector<32x4xf32> to vector<32x4x1xf32>
    %cst_4 = arith.constant 3.200000e+01 : f32
    %6 = vector.broadcast %cst_4 : f32 to vector<32x4x1xf32>
    %7 = arith.divf %5, %6 : vector<32x4x1xf32>
    %8 = vector.broadcast %7 : vector<32x4x1xf32> to vector<32x4x32xf32>
    %9 = arith.subf %3, %8 : vector<32x4x32xf32>
    %10 = arith.mulf %9, %9 : vector<32x4x32xf32>
    %cst_5 = arith.constant dense<0.000000e+00> : vector<32x4xf32>
    %11 = vector.multi_reduction <add>, %10, %cst_5 [2] : vector<32x4x32xf32> to vector<32x4xf32>
    %12 = vector.shape_cast %11 : vector<32x4xf32> to vector<32x4x1xf32>
    %cst_6 = arith.constant 3.200000e+01 : f32
    %13 = vector.broadcast %cst_6 : f32 to vector<32x4x1xf32>
    %14 = arith.divf %12, %13 : vector<32x4x1xf32>
    %15 = vector.broadcast %7 : vector<32x4x1xf32> to vector<32x4x32xf32>
    %16 = arith.subf %3, %15 : vector<32x4x32xf32>
    %cst_7 = arith.constant 9.99999974E-6 : f32
    %17 = vector.broadcast %cst_7 : f32 to vector<32x4x1xf32>
    %18 = arith.addf %14, %17 : vector<32x4x1xf32>
    %19 = math.rsqrt %18 : vector<32x4x1xf32>
    %20 = vector.broadcast %19 : vector<32x4x1xf32> to vector<32x4x32xf32>
    %21 = arith.mulf %16, %20 : vector<32x4x32xf32>
    %22 = vector.shape_cast %21 : vector<32x4x32xf32> to vector<32x128xf32>
    %c0_8 = arith.constant 0 : index
    %c0_9 = arith.constant 0 : index
    %23 = vector.load %arg3[%c0_8, %c0_9] : memref<1x128xf32, #tpu.memory_space<vmem>>, vector<1x128xf32>
    %24 = vector.broadcast %23 : vector<1x128xf32> to vector<32x128xf32>
    %25 = arith.mulf %22, %24 : vector<32x128xf32>
    %c0_10 = arith.constant 0 : index
    %c0_11 = arith.constant 0 : index
    %26 = vector.load %arg4[%c0_10, %c0_11] : memref<1x128xf32, #tpu.memory_space<vmem>>, vector<1x128xf32>
    %27 = vector.broadcast %26 : vector<1x128xf32> to vector<32x128xf32>
    %28 = arith.addf %25, %27 : vector<32x128xf32>
    %29 = vector.extract_strided_slice %28 {offsets = [0, 0], sizes = [32, 64], strides = [1, 1]} : vector<32x128xf32> to vector<32x64xf32>
    %30 = vector.shape_cast %29 : vector<32x64xf32> to vector<4x8x64xf32>
    %c0_12 = arith.constant 0 : index
    %c0_13 = arith.constant 0 : index
    %c0_14 = arith.constant 0 : index
    %c0_15 = arith.constant 0 : index
    %31 = vector.load %arg5[%c0_12, %c0_13, %c0_14, %c0_15] : memref<4x2x8x64xf32, #tpu.memory_space<vmem>>, vector<4x1x8x64xf32>
    %32 = vector.shape_cast %31 : vector<4x1x8x64xf32> to vector<4x8x64xf32>
    %33 = vector.shape_cast %30 : vector<4x8x64xf32> to vector<4x1x8x64xf32>
    tpu.vector_store %arg5[%c0_12, %c0_13, %c0_14, %c0_15], %33 {strides = array<i32>} : memref<4x2x8x64xf32, #tpu.memory_space<vmem>>, vector<4x1x8x64xf32>,
    %34 = vector.extract_strided_slice %28 {offsets = [0, 64], sizes = [32, 64], strides = [1, 1]} : vector<32x128xf32> to vector<32x64xf32>
    %35 = vector.shape_cast %34 : vector<32x64xf32> to vector<4x8x64xf32>
    %c0_16 = arith.constant 0 : index
    %c1 = arith.constant 1 : index
    %c0_17 = arith.constant 0 : index
    %c0_18 = arith.constant 0 : index
    %36 = vector.load %arg5[%c0_16, %c1, %c0_17, %c0_18] : memref<4x2x8x64xf32, #tpu.memory_space<vmem>>, vector<4x1x8x64xf32>
    %37 = vector.shape_cast %36 : vector<4x1x8x64xf32> to vector<4x8x64xf32>
    %38 = vector.shape_cast %35 : vector<4x8x64xf32> to vector<4x1x8x64xf32>
    tpu.vector_store %arg5[%c0_16, %c1, %c0_17, %c0_18], %38 {strides = array<i32>} : memref<4x2x8x64xf32, #tpu.memory_space<vmem>>, vector<4x1x8x64xf32>,
    return
  }
  func.func @transform_0(%arg0: i32) -> (i32, i32) {
    %c0_i32 = arith.constant 0 : i32
    %c0_i32_0 = arith.constant 0 : i32
    return %arg0, %c0_i32 : i32, i32
  }
  func.func @transform_1(%arg0: i32) -> (i32, i32) {
    %c0_i32 = arith.constant 0 : i32
    %c0_i32_0 = arith.constant 0 : i32
    %c0_i32_1 = arith.constant 0 : i32
    return %c0_i32, %c0_i32_0 : i32, i32
  }
  func.func @transform_2(%arg0: i32) -> (i32, i32) {
    %c0_i32 = arith.constant 0 : i32
    %c0_i32_0 = arith.constant 0 : i32
    %c0_i32_1 = arith.constant 0 : i32
    return %c0_i32, %c0_i32_0 : i32, i32
  }
  func.func @transform_3(%arg0: i32) -> (i32, i32) {
    %c0_i32 = arith.constant 0 : i32
    %c0_i32_0 = arith.constant 0 : i32
    %c0_i32_1 = arith.constant 0 : i32
    return %c0_i32, %c0_i32_0 : i32, i32
  }
  func.func @transform_4(%arg0: i32) -> (i32, i32, i32, i32) {
    %c0_i32 = arith.constant 0 : i32
    %c0_i32_0 = arith.constant 0 : i32
    %c0_i32_1 = arith.constant 0 : i32
    %c0_i32_2 = arith.constant 0 : i32
    return %arg0, %c0_i32, %c0_i32_0, %c0_i32_1 : i32, i32, i32, i32
  }
}

module attributes {stable_mosaic.version = 11 : i64} {
  func.func @kernel(%arg0: i32, %arg1: memref<32x64xf32, #tpu.memory_space<vmem>>, %arg2: memref<64x128xf32, #tpu.memory_space<vmem>>, %arg3: memref<1x128xf32, #tpu.memory_space<vmem>>, %arg4: memref<1x128xf32, #tpu.memory_space<vmem>>, %arg5: memref<4x2x8x64xf32, #tpu.memory_space<vmem>>) attributes {dimension_semantics = [#tpu.dimension_semantics<parallel>], iteration_bounds = array<i64: 4>, scalar_prefetch = 0 : i64, scratch_operands = 0 : i64, tpu.core_type = #tpu.core_type<tc>, window_params = [{transform_indices = @transform_0, window_bounds = array<i64: 32, 64>}, {pipeline_mode = #tpu.pipeline_mode<synchronous>, transform_indices = @transform_1, window_bounds = array<i64: 64, 128>}, {pipeline_mode = #tpu.pipeline_mode<synchronous>, transform_indices = @transform_2, window_bounds = array<i64: 1, 128>}, {pipeline_mode = #tpu.pipeline_mode<synchronous>, transform_indices = @transform_3, window_bounds = array<i64: 1, 128>}, {transform_indices = @transform_4, window_bounds = array<i64: 4, 2, 8, 64>}]} {
    %c0 = arith.constant 0 : index
    %c0_0 = arith.constant 0 : index
    %0 = vector.load %arg1[%c0, %c0_0] : memref<32x64xf32, #tpu.memory_space<vmem>>, vector<32x64xf32>
    %c0_1 = arith.constant 0 : index
    %c0_2 = arith.constant 0 : index
    %1 = vector.load %arg2[%c0_1, %c0_2] : memref<64x128xf32, #tpu.memory_space<vmem>>, vector<64x128xf32>
    %cst = arith.constant dense<0.000000e+00> : vector<32x128xf32>
    %2 = tpu.matmul %0, %1, %cst {dimension_numbers = #tpu.dot_dimension_numbers<[1], [0], [0], [1], [0, 0, 1, 1], [], []>} : vector<32x64xf32>, vector<64x128xf32>, vector<32x128xf32> -> vector<32x128xf32>
    %3 = vector.shape_cast %2 : vector<32x128xf32> to vector<32x4x32xf32>
    %cst_3 = arith.constant dense<0.000000e+00> : vector<32x4xf32>
    %4 = vector.multi_reduction <add>, %3, %cst_3 [2] : vector<32x4x32xf32> to vector<32x4xf32>
    %5 = vector.shape_cast %4 : vector<32x4xf32> to vector<32x4x1xf32>
    %cst_4 = arith.constant 3.200000e+01 : f32
    %6 = vector.broadcast %cst_4 : f32 to vector<32x4x1xf32>
    %7 = arith.divf %5, %6 : vector<32x4x1xf32>
    %8 = vector.broadcast %7 : vector<32x4x1xf32> to vector<32x4x32xf32>
    %9 = arith.subf %3, %8 : vector<32x4x32xf32>
    %10 = arith.mulf %9, %9 : vector<32x4x32xf32>
    %cst_5 = arith.constant dense<0.000000e+00> : vector<32x4xf32>
    %11 = vector.multi_reduction <add>, %10, %cst_5 [2] : vector<32x4x32xf32> to vector<32x4xf32>
    %12 = vector.shape_cast %11 : vector<32x4xf32> to vector<32x4x1xf32>
    %cst_6 = arith.constant 3.200000e+01 : f32
    %13 = vector.broadcast %cst_6 : f32 to vector<32x4x1xf32>
    %14 = arith.divf %12, %13 : vector<32x4x1xf32>
    %15 = vector.broadcast %7 : vector<32x4x1xf32> to vector<32x4x32xf32>
    %16 = arith.subf %3, %15 : vector<32x4x32xf32>
    %cst_7 = arith.constant 9.99999974E-6 : f32
    %17 = vector.broadcast %cst_7 : f32 to vector<32x4x1xf32>
    %18 = arith.addf %14, %17 : vector<32x4x1xf32>
    %19 = math.rsqrt %18 : vector<32x4x1xf32>
    %20 = vector.broadcast %19 : vector<32x4x1xf32> to vector<32x4x32xf32>
    %21 = arith.mulf %16, %20 : vector<32x4x32xf32>
    %22 = vector.shape_cast %21 : vector<32x4x32xf32> to vector<32x128xf32>
    %c0_8 = arith.constant 0 : index
    %c0_9 = arith.constant 0 : index
    %23 = vector.load %arg3[%c0_8, %c0_9] : memref<1x128xf32, #tpu.memory_space<vmem>>, vector<1x128xf32>
    %24 = vector.broadcast %23 : vector<1x128xf32> to vector<32x128xf32>
    %25 = arith.mulf %22, %24 : vector<32x128xf32>
    %c0_10 = arith.constant 0 : index
    %c0_11 = arith.constant 0 : index
    %26 = vector.load %arg4[%c0_10, %c0_11] : memref<1x128xf32, #tpu.memory_space<vmem>>, vector<1x128xf32>
    %27 = vector.broadcast %26 : vector<1x128xf32> to vector<32x128xf32>
    %28 = arith.addf %25, %27 : vector<32x128xf32>
    %29 = vector.extract_strided_slice %28 {offsets = [0, 0], sizes = [32, 64], strides = [1, 1]} : vector<32x128xf32> to vector<32x64xf32>
    %30 = vector.shape_cast %29 : vector<32x64xf32> to vector<4x8x64xf32>
    %c0_12 = arith.constant 0 : index
    %c0_13 = arith.constant 0 : index
    %c0_14 = arith.constant 0 : index
    %c0_15 = arith.constant 0 : index
    %31 = vector.load %arg5[%c0_12, %c0_13, %c0_14, %c0_15] : memref<4x2x8x64xf32, #tpu.memory_space<vmem>>, vector<4x1x8x64xf32>
    %32 = vector.shape_cast %31 : vector<4x1x8x64xf32> to vector<4x8x64xf32>
    %33 = vector.shape_cast %30 : vector<4x8x64xf32> to vector<4x1x8x64xf32>
    tpu.vector_store %arg5[%c0_12, %c0_13, %c0_14, %c0_15], %33 {strides = array<i32>} : memref<4x2x8x64xf32, #tpu.memory_space<vmem>>, vector<4x1x8x64xf32>,
    %34 = vector.extract_strided_slice %28 {offsets = [0, 64], sizes = [32, 64], strides = [1, 1]} : vector<32x128xf32> to vector<32x64xf32>
    %35 = vector.shape_cast %34 : vector<32x64xf32> to vector<4x8x64xf32>
    %c0_16 = arith.constant 0 : index
    %c1 = arith.constant 1 : index
    %c0_17 = arith.constant 0 : index
    %c0_18 = arith.constant 0 : index
    %36 = vector.load %arg5[%c0_16, %c1, %c0_17, %c0_18] : memref<4x2x8x64xf32, #tpu.memory_space<vmem>>, vector<4x1x8x64xf32>
    %37 = vector.shape_cast %36 : vector<4x1x8x64xf32> to vector<4x8x64xf32>
    %38 = vector.shape_cast %35 : vector<4x8x64xf32> to vector<4x1x8x64xf32>
    tpu.vector_store %arg5[%c0_16, %c1, %c0_17, %c0_18], %38 {strides = array<i32>} : memref<4x2x8x64xf32, #tpu.memory_space<vmem>>, vector<4x1x8x64xf32>,
    return
  }
  func.func @transform_0(%arg0: i32) -> (i32, i32) {
    %c0_i32 = arith.constant 0 : i32
    %c0_i32_0 = arith.constant 0 : i32
    return %arg0, %c0_i32 : i32, i32
  }
  func.func @transform_1(%arg0: i32) -> (i32, i32) {
    %c0_i32 = arith.constant 0 : i32
    %c0_i32_0 = arith.constant 0 : i32
    %c0_i32_1 = arith.constant 0 : i32
    return %c0_i32, %c0_i32_0 : i32, i32
  }
  func.func @transform_2(%arg0: i32) -> (i32, i32) {
    %c0_i32 = arith.constant 0 : i32
    %c0_i32_0 = arith.constant 0 : i32
    %c0_i32_1 = arith.constant 0 : i32
    return %c0_i32, %c0_i32_0 : i32, i32
  }
  func.func @transform_3(%arg0: i32) -> (i32, i32) {
    %c0_i32 = arith.constant 0 : i32
    %c0_i32_0 = arith.constant 0 : i32
    %c0_i32_1 = arith.constant 0 : i32
    return %c0_i32, %c0_i32_0 : i32, i32
  }
  func.func @transform_4(%arg0: i32) -> (i32, i32, i32, i32) {
    %c0_i32 = arith.constant 0 : i32
    %c0_i32_0 = arith.constant 0 : i32
    %c0_i32_1 = arith.constant 0 : i32
    %c0_i32_2 = arith.constant 0 : i32
    return %arg0, %c0_i32, %c0_i32_0, %c0_i32_1 : i32, i32, i32, i32
  }
}

</mosaic_0001>

<llo_original>
// kernel: tpu_custom_call.1
$region0: #{tpu_custom_call.1}
  #allocation0 [shape = 'u32[]', space=smem, size = 0x4, offset = 0x4, fixed_abs, tag = 'smem constant byte address 0x4 - core index']
  #allocation1 [shape = 'u32[72,128]{1,0:T(1,128)}', space=vmem, size = 0x9000, scoped, tag = 'internal scratch']
  %s0 = inlined_call_operand.vmem [shape: f32[128,64], index: 0, kind: input, shape index: {}]
  %s1 = inlined_call_operand.vmem [shape: f32[64,128], index: 1, kind: input, shape index: {}]
  %s2 = inlined_call_operand.vmem [shape: f32[1,128], index: 2, kind: input, shape index: {}]
  %s3 = inlined_call_operand.vmem [shape: f32[1,128], index: 3, kind: input, shape index: {}]
  %s4 = inlined_call_operand.hbm [shape: f32[16,2,8,64], index: 4, kind: output, shape index: {}]
  %s5 = sld [smem:[#allocation0]]
  $region49: #{tpu_custom_call.1} parent=0
    _
  %s7 = ssub.s32 1, %s5
  %s8 = scalar_select 0, %s7, %s5
  $region1: #{tpu_custom_call.1} parent=0
    #allocation2 [shape = 'u8[65536]{0}', space=vmem, size = 0x10000, scoped, tag = 'output window, operand 0']
    #allocation3 [shape = 's32[2]{0}', space=sflag, size = 0x8, scoped, tag = 'scoped memory for tpu_custom_call.1']
    %9 = vsyncpa [#allocation3], 0
    %s10 = scalar_lea.sflag [#allocation3], 1
    %11 = vsyncpa %s10, 0
    loop: start=0, step=1, limit=6
    $region2: #{tpu_custom_call.1} parent=1 // loop_pre_header
      _
    $region3: #{tpu_custom_call.1} parent=1 // loop_header
      %s13 = sphi 0, %s17
      %p14 = scmp.ge.s32.totalorder %s13, 6
      %s23 = sphi 0, %s25
      %s26 = sphi 0, %s23
      %s27 = sphi 0, %s26
      %s43 = sphi 0, %s27
      %s47 = sphi 0, %s47
      %s49 = sphi 0, %s47
      %s50 = sphi 0, %s49
      %s64 = sphi 0, %s50
      %s68 = sphi 0, %s68
      %s70 = sphi 0, %s68
      %s71 = sphi 0, %s70
      %s85 = sphi 0, %s71
      %s89 = sphi 0, %s89
      %s91 = sphi 0, %s89
      %s92 = sphi 0, %s91
      %s106 = sphi 0, %s92
      %s112 = sphi 0, %s114
      %s115 = sphi 0, %s112
      %s116 = sphi 0, %s115
      %s132 = sphi 0, %s116
    $region4: #{tpu_custom_call.1} parent=1 // loop_header_branch
      %16 = sbr.rel (%p14) target = $region8
    $region5: #{tpu_custom_call.1} parent=1 // loop_body
      %s18 = ssub.s32 %s13, 1
      %s19 = ssub.s32 %s13, 2
      %s20 = sadd.s32 %s13, 1
      %s21 = ssub.s32 %s13, %s20
      %p22 = scmp.eq.s32.totalorder %s21, 0
      %s24 = sadd.s32 %s23, 1
      %s25 = scalar_select %p22, %s23, %s24
      %p28 = pneg %p22
      %p29 = scmp.eq.s32.totalorder %s13, 3
      %p30 = por %p28, %p29
      %p31 = scmp.ne.s32.totalorder %s23, %s26
      %p32 = scmp.eq.s32.totalorder %s13, 0
      %p33 = por %p31, %p32
      %p34 = scmp.ne.s32.totalorder %s23, %s26
      %p35 = scmp.eq.s32.totalorder %s18, 3
      %p36 = por %p34, %p35
      %p37 = scmp.ne.s32.totalorder %s26, %s27
      %p38 = scmp.eq.s32.totalorder %s18, 0
      %p39 = por %p37, %p38
      %p40 = scmp.ne.s32.totalorder %s26, %s27
      %p41 = scmp.eq.s32.totalorder %s19, 3
      %p42 = por %p40, %p41
      %p44 = scmp.ne.s32.totalorder %s27, %s43
      %p45 = scmp.eq.s32.totalorder %s19, 0
      %p46 = por %p44, %p45
      %s48 = sadd.s32 %s47, 1
      %p51 = scmp.eq.s32.totalorder %s13, 3
      %p52 = scmp.ne.s32.totalorder %s47, %s49
      %p53 = scmp.eq.s32.totalorder %s13, 0
      %p54 = por %p52, %p53
      %p55 = scmp.ne.s32.totalorder %s47, %s49
      %p56 = scmp.eq.s32.totalorder %s18, 3
      %p57 = por %p55, %p56
      %p58 = scmp.ne.s32.totalorder %s49, %s50
      %p59 = scmp.eq.s32.totalorder %s18, 0
      %p60 = por %p58, %p59
      %p61 = scmp.ne.s32.totalorder %s49, %s50
      %p62 = scmp.eq.s32.totalorder %s19, 3
      %p63 = por %p61, %p62
      %p65 = scmp.ne.s32.totalorder %s50, %s64
      %p66 = scmp.eq.s32.totalorder %s19, 0
      %p67 = por %p65, %p66
      %s69 = sadd.s32 %s68, 1
      %p72 = scmp.eq.s32.totalorder %s13, 3
      %p73 = scmp.ne.s32.totalorder %s68, %s70
      %p74 = scmp.eq.s32.totalorder %s13, 0
      %p75 = por %p73, %p74
      %p76 = scmp.ne.s32.totalorder %s68, %s70
      %p77 = scmp.eq.s32.totalorder %s18, 3
      %p78 = por %p76, %p77
      %p79 = scmp.ne.s32.totalorder %s70, %s71
      %p80 = scmp.eq.s32.totalorder %s18, 0
      %p81 = por %p79, %p80
      %p82 = scmp.ne.s32.totalorder %s70, %s71
      %p83 = scmp.eq.s32.totalorder %s19, 3
      %p84 = por %p82, %p83
      %p86 = scmp.ne.s32.totalorder %s71, %s85
      %p87 = scmp.eq.s32.totalorder %s19, 0
      %p88 = por %p86, %p87
      %s90 = sadd.s32 %s89, 1
      %p93 = scmp.eq.s32.totalorder %s13, 3
      %p94 = scmp.ne.s32.totalorder %s89, %s91
      %p95 = scmp.eq.s32.totalorder %s13, 0
      %p96 = por %p94, %p95
      %p97 = scmp.ne.s32.totalorder %s89, %s91
      %p98 = scmp.eq.s32.totalorder %s18, 3
      %p99 = por %p97, %p98
      %p100 = scmp.ne.s32.totalorder %s91, %s92
      %p101 = scmp.eq.s32.totalorder %s18, 0
      %p102 = por %p100, %p101
      %p103 = scmp.ne.s32.totalorder %s91, %s92
      %p104 = scmp.eq.s32.totalorder %s19, 3
      %p105 = por %p103, %p104
      %p107 = scmp.ne.s32.totalorder %s92, %s106
      %p108 = scmp.eq.s32.totalorder %s19, 0
      %p109 = por %p107, %p108
      %s110 = ssub.s32 %s13, %s20
      %p111 = scmp.eq.s32.totalorder %s110, 0
      %s113 = sadd.s32 %s112, 1
      %s114 = scalar_select %p111, %s112, %s113
      %p117 = pneg %p111
      %p118 = scmp.eq.s32.totalorder %s13, 3
      %p119 = por %p117, %p118
      %p120 = scmp.ne.s32.totalorder %s112, %s115
      %p121 = scmp.eq.s32.totalorder %s13, 0
      %p122 = por %p120, %p121
      %p123 = scmp.ne.s32.totalorder %s112, %s115
      %p124 = scmp.eq.s32.totalorder %s18, 3
      %p125 = por %p123, %p124
      %p126 = scmp.ne.s32.totalorder %s115, %s116
      %p127 = scmp.eq.s32.totalorder %s18, 0
      %p128 = por %p126, %p127
      %p129 = scmp.ne.s32.totalorder %s115, %s116
      %p130 = scmp.eq.s32.totalorder %s19, 3
      %p131 = por %p129, %p130
      %p133 = scmp.ne.s32.totalorder %s116, %s132
      %p134 = scmp.eq.s32.totalorder %s19, 0
      %p135 = por %p133, %p134
      %p136 = scmp.le.s32.totalorder 1, %s13
      %p137 = scmp.lt.s32.totalorder %s13, 5
      %p138 = pnand %p136, %p137
      %p139 = pneg %p138
      // Predicated region
      $region9: #{tpu_custom_call.1} parent=5 // pred_check
        _
      $region10: #{tpu_custom_call.1} parent=5 // pred_check_branch
        %141 = sbr.rel (%p138) target = $region12
      $region11: #{tpu_custom_call.1} parent=5 // pred_region
        %s142 = ssub.s32 %s13, 1
        // Predicated region
        $region13: #{tpu_custom_call.1} parent=11 // pred_check
          %p143 = pneg %p60
        $region14: #{tpu_custom_call.1} parent=11 // pred_check_branch
          %145 = sbr.rel (%p143) target = $region16
        $region15: #{tpu_custom_call.1} parent=11 // pred_region
          _
        $region16: #{tpu_custom_call.1} parent=11 // pred_fallthru
          _
        // Predicated region
        $region17: #{tpu_custom_call.1} parent=11 // pred_check
          %p146 = pneg %p81
        $region18: #{tpu_custom_call.1} parent=11 // pred_check_branch
          %148 = sbr.rel (%p146) target = $region20
        $region19: #{tpu_custom_call.1} parent=11 // pred_region
          _
        $region20: #{tpu_custom_call.1} parent=11 // pred_fallthru
          _
        // Predicated region
        $region21: #{tpu_custom_call.1} parent=11 // pred_check
          %p149 = pneg %p102
        $region22: #{tpu_custom_call.1} parent=11 // pred_check_branch
          %151 = sbr.rel (%p149) target = $region24
        $region23: #{tpu_custom_call.1} parent=11 // pred_region
          _
        $region24: #{tpu_custom_call.1} parent=11 // pred_fallthru
          _
      $region12: #{tpu_custom_call.1} parent=5 // pred_fallthru
        _
      %p152 = scmp.lt.s32.totalorder %s13, 4
      // Predicated region
      $region25: #{tpu_custom_call.1} parent=5 // pred_check
        %p153 = pneg %p152
      $region26: #{tpu_custom_call.1} parent=5 // pred_check_branch
        %155 = sbr.rel (%p153) target = $region28
      $region27: #{tpu_custom_call.1} parent=5 // pred_region
        // Predicated region
        $region29: #{tpu_custom_call.1} parent=27 // pred_check
          %p156 = pneg %p33
        $region30: #{tpu_custom_call.1} parent=27 // pred_check_branch
          %158 = sbr.rel (%p156) target = $region32
        $region31: #{tpu_custom_call.1} parent=27 // pred_region
          %s159 = smul.u32 4, %s13
          %p160 = scmp.lt.s32.totalorder %s159, 15
          %s161 = scalar_select %p160, %s159, 15
          %s162 = smul.addr %s161, 8
          %s163 = scalar_lea.vmem %s0, %s162
          %s164 = smul.u32 4, %s13
        $region32: #{tpu_custom_call.1} parent=27 // pred_fallthru
          _
      $region28: #{tpu_custom_call.1} parent=5 // pred_fallthru
        _
      %p165 = scmp.le.s32.totalorder 1, %s13
      %p166 = scmp.lt.s32.totalorder %s13, 5
      %p167 = pnand %p165, %p166
      %p168 = pneg %p167
      // Predicated region
      $region33: #{tpu_custom_call.1} parent=5 // pred_check
        _
      $region34: #{tpu_custom_call.1} parent=5 // pred_check_branch
        %170 = sbr.rel (%p167) target = $region36
      $region35: #{tpu_custom_call.1} parent=5 // pred_region
        %s171 = ssub.s32 %s13, 1
        %s172 = smul.u32 4, %s18
        %p173 = scmp.lt.s32.totalorder %s172, 15
        %s174 = scalar_select %p173, %s172, 15
        %s175 = smul.addr %s174, 8
        %s176 = scalar_lea.vmem %s0, %s175
        %p177 = pneg %p39
        %p178 = pneg %p36
        %p179 = pneg %p60
        %p180 = pneg %p57
        %p181 = pneg %p81
        %p182 = pneg %p78
        %p183 = pneg %p102
        %p184 = pneg %p99
        %p185 = pneg %p128
        %p186 = pneg %p125
        %s187 = sand.u32 %s115, 1
        %s188 = scalar_lea.sflag [#allocation3], %s187
        %s189 = sand.u32 %s115, 1
        %s190 = smul.addr %s189, 64
        %s191 = scalar_lea.vmem [#allocation2], %s190
        %s192 = smul.u32 4, %s18
        %p193 = scmp.lt.s32.totalorder %s192, 15
        %s194 = scalar_select %p193, %s192, 15
        %s195 = smul.addr %s194, 8
        %s196 = scalar_lea.vmem %s0, %s195
        %s197 = smul.u32 4, %s18
        %s198 = smul.u32 4, %s18
        %v199 = vld [vmem:[%s196] sm:$0xff]
        %v200 = vld [vmem:[%s196 + $0x8] sm:$0xff]
        %v201 = vld [vmem:[%s196 + $0x10] sm:$0xff]
        %v202 = vld [vmem:[%s196 + $0x18] sm:$0xff]
        %v203 = vld [vmem:[%s1] sm:$0xff]
        %v204 = vld [vmem:[%s1 + $0x8] sm:$0xff]
        %v205 = vld [vmem:[%s1 + $0x10] sm:$0xff]
        %v206 = vld [vmem:[%s1 + $0x18] sm:$0xff]
        %v207 = vld [vmem:[%s1 + $0x20] sm:$0xff]
        %v208 = vld [vmem:[%s1 + $0x28] sm:$0xff]
        %v209 = vld [vmem:[%s1 + $0x30] sm:$0xff]
        %v210 = vld [vmem:[%s1 + $0x38] sm:$0xff]
        %vm211 = vcmask 523264
        %v213 = vsel %vm211, %v199, 0
        %v216 = vsel %vm211, %v200, 0
        %v219 = vsel %vm211, %v201, 0
        %v222 = vsel %vm211, %v202, 0
        %224 = vmatpush.msra.mxu0 0.0
        %225 = vmatpush.msra.mxu0 0.0
        %226 = vmatpush.msra.mxu0 0.0
        %227 = vmatpush.msra.mxu0 0.0
        %228 = vmatpush.msra.mxu0 0.0
        %229 = vmatpush.msra.mxu0 0.0
        %230 = vmatpush.msra.mxu0 0.0
        %231 = vmatpush.msra.mxu0 0.0
        %232 = vmatpush.msra.mxu0 %v210
        %233 = vmatpush.msra.mxu0 %v209
        %234 = vmatpush.msra.mxu0 %v208
        %235 = vmatpush.msra.mxu0 %v207
        %236 = vmatpush.msra.mxu0 %v206
        %237 = vmatpush.msra.mxu0 %v205
        %238 = vmatpush.msra.mxu0 %v204
        %239 = vmatpush.msra.mxu0 %v203
        %240 = vmatmul.f32.gmra.mxu0 %v213
        %v241 = vpop.f32.mrf.mxu0
        %v242 = vadd.f32 0.0, %v241
        %243 = vmatmul.f32.gmra.mxu0 %v216
        %v244 = vpop.f32.mrf.mxu0
        %v245 = vadd.f32 0.0, %v244
        %246 = vmatmul.f32.gmra.mxu0 %v219
        %v247 = vpop.f32.mrf.mxu0
        %v248 = vadd.f32 0.0, %v247
        %249 = vmatmul.f32.gmra.mxu0 %v222
        %v250 = vpop.f32.mrf.mxu0
        %v251 = vadd.f32 0.0, %v250
        %252 = vdwg.mxu0
        %257 = vrot.lane.b32.xlu0 %v242, 96
        %v258 = vpop.permute.xlu0 %257
        %259 = vrot.lane.b32.xlu0 %v245, 96
        %v260 = vpop.permute.xlu0 %259
        %261 = vrot.lane.b32.xlu0 %v248, 96
        %v262 = vpop.permute.xlu0 %261
        %263 = vrot.lane.b32.xlu0 %v251, 96
        %v264 = vpop.permute.xlu0 %263
        %269 = vrot.lane.b32.xlu0 %v242, 64
        %v270 = vpop.permute.xlu0 %269
        %271 = vrot.lane.b32.xlu0 %v245, 64
        %v272 = vpop.permute.xlu0 %271
        %273 = vrot.lane.b32.xlu0 %v248, 64
        %v274 = vpop.permute.xlu0 %273
        %275 = vrot.lane.b32.xlu0 %v251, 64
        %v276 = vpop.permute.xlu0 %275
        %281 = vrot.lane.b32.xlu0 %v242, 32
        %v282 = vpop.permute.xlu0 %281
        %283 = vrot.lane.b32.xlu0 %v245, 32
        %v284 = vpop.permute.xlu0 %283
        %285 = vrot.lane.b32.xlu0 %v248, 32
        %v286 = vpop.permute.xlu0 %285
        %287 = vrot.lane.b32.xlu0 %v251, 32
        %v288 = vpop.permute.xlu0 %287
        %v293 = vrot.slane %v270, 4
        %vm294 = vcmask 1047556
        %v295 = vsel %vm294, %v293, %v242
        %v296 = vrot.slane %v242, 4
        %v297 = vsel %vm294, %v270, %v296
        %v299 = vunpack.c.l.s4 1983009808
        %v300 = vunpack.c.0.s8 %v299
        %v301 = vperm.slane %v295, %v300
        %v303 = vunpack.c.l.s4 1983009808
        %v304 = vunpack.c.0.s8 %v303
        %v305 = vperm.slane %v297, %v304
        %v306 = vrot.slane %v282, 4
        %v307 = vsel %vm294, %v306, %v258
        %v308 = vrot.slane %v258, 4
        %v309 = vsel %vm294, %v282, %v308
        %v311 = vunpack.c.l.s4 1983009808
        %v312 = vunpack.c.0.s8 %v311
        %v313 = vperm.slane %v307, %v312
        %v315 = vunpack.c.l.s4 1983009808
        %v316 = vunpack.c.0.s8 %v315
        %v317 = vperm.slane %v309, %v316
        %v318 = vrot.slane %v313, 4
        %v319 = vsel %vm294, %v318, %v301
        %v320 = vrot.slane %v301, 4
        %v321 = vsel %vm294, %v313, %v320
        %v323 = vunpack.c.l.s4 1934713408
        %v324 = vunpack.c.0.s8 %v323
        %v325 = vperm.slane %v319, %v324
        %v327 = vunpack.c.l.s4 1934713408
        %v328 = vunpack.c.0.s8 %v327
        %v329 = vperm.slane %v321, %v328
        %v330 = vrot.slane %v317, 4
        %v331 = vsel %vm294, %v330, %v305
        %v332 = vrot.slane %v305, 4
        %v333 = vsel %vm294, %v317, %v332
        %v335 = vunpack.c.l.s4 1934713408
        %v336 = vunpack.c.0.s8 %v335
        %v337 = vperm.slane %v331, %v336
        %v339 = vunpack.c.l.s4 1934713408
        %v340 = vunpack.c.0.s8 %v339
        %v341 = vperm.slane %v333, %v340
        %v342 = vrot.slane %v325, 4
        %v343 = vsel %vm294, 0.0, %v342
        %v344 = vrot.slane %v329, 4
        %v345 = vsel %vm294, 0.0, %v344
        %v346 = vrot.slane %v337, 4
        %v347 = vsel %vm294, 0.0, %v346
        %v348 = vrot.slane %v341, 4
        %v349 = vsel %vm294, 0.0, %v348
        %v350 = vrot.slane %v272, 4
        %v351 = vsel %vm294, %v350, %v245
        %v352 = vrot.slane %v245, 4
        %v353 = vsel %vm294, %v272, %v352
        %v355 = vunpack.c.l.s4 1983009808
        %v356 = vunpack.c.0.s8 %v355
        %v357 = vperm.slane %v351, %v356
        %v359 = vunpack.c.l.s4 1983009808
        %v360 = vunpack.c.0.s8 %v359
        %v361 = vperm.slane %v353, %v360
        %v362 = vrot.slane %v284, 4
        %v363 = vsel %vm294, %v362, %v260
        %v364 = vrot.slane %v260, 4
        %v365 = vsel %vm294, %v284, %v364
        %v367 = vunpack.c.l.s4 1983009808
        %v368 = vunpack.c.0.s8 %v367
        %v369 = vperm.slane %v363, %v368
        %v371 = vunpack.c.l.s4 1983009808
        %v372 = vunpack.c.0.s8 %v371
        %v373 = vperm.slane %v365, %v372
        %v374 = vrot.slane %v369, 4
        %v375 = vsel %vm294, %v374, %v357
        %v376 = vrot.slane %v357, 4
        %v377 = vsel %vm294, %v369, %v376
        %v379 = vunpack.c.l.s4 1934713408
        %v380 = vunpack.c.0.s8 %v379
        %v381 = vperm.slane %v375, %v380
        %v383 = vunpack.c.l.s4 1934713408
        %v384 = vunpack.c.0.s8 %v383
        %v385 = vperm.slane %v377, %v384
        %v386 = vrot.slane %v373, 4
        %v387 = vsel %vm294, %v386, %v361
        %v388 = vrot.slane %v361, 4
        %v389 = vsel %vm294, %v373, %v388
        %v391 = vunpack.c.l.s4 1934713408
        %v392 = vunpack.c.0.s8 %v391
        %v393 = vperm.slane %v387, %v392
        %v395 = vunpack.c.l.s4 1934713408
        %v396 = vunpack.c.0.s8 %v395
        %v397 = vperm.slane %v389, %v396
        %v398 = vrot.slane %v381, 4
        %v399 = vsel %vm294, 0.0, %v398
        %v400 = vrot.slane %v385, 4
        %v401 = vsel %vm294, 0.0, %v400
        %v402 = vrot.slane %v393, 4
        %v403 = vsel %vm294, 0.0, %v402
        %v404 = vrot.slane %v397, 4
        %v405 = vsel %vm294, 0.0, %v404
        %v406 = vrot.slane %v274, 4
        %v407 = vsel %vm294, %v406, %v248
        %v408 = vrot.slane %v248, 4
        %v409 = vsel %vm294, %v274, %v408
        %v411 = vunpack.c.l.s4 1983009808
        %v412 = vunpack.c.0.s8 %v411
        %v413 = vperm.slane %v407, %v412
        %v415 = vunpack.c.l.s4 1983009808
        %v416 = vunpack.c.0.s8 %v415
        %v417 = vperm.slane %v409, %v416
        %v418 = vrot.slane %v286, 4
        %v419 = vsel %vm294, %v418, %v262
        %v420 = vrot.slane %v262, 4
        %v421 = vsel %vm294, %v286, %v420
        %v423 = vunpack.c.l.s4 1983009808
        %v424 = vunpack.c.0.s8 %v423
        %v425 = vperm.slane %v419, %v424
        %v427 = vunpack.c.l.s4 1983009808
        %v428 = vunpack.c.0.s8 %v427
        %v429 = vperm.slane %v421, %v428
        %v430 = vrot.slane %v425, 4
        %v431 = vsel %vm294, %v430, %v413
        %v432 = vrot.slane %v413, 4
        %v433 = vsel %vm294, %v425, %v432
        %v435 = vunpack.c.l.s4 1934713408
        %v436 = vunpack.c.0.s8 %v435
        %v437 = vperm.slane %v431, %v436
        %v439 = vunpack.c.l.s4 1934713408
        %v440 = vunpack.c.0.s8 %v439
        %v441 = vperm.slane %v433, %v440
        %v442 = vrot.slane %v429, 4
        %v443 = vsel %vm294, %v442, %v417
        %v444 = vrot.slane %v417, 4
        %v445 = vsel %vm294, %v429, %v444
        %v447 = vunpack.c.l.s4 1934713408
        %v448 = vunpack.c.0.s8 %v447
        %v449 = vperm.slane %v443, %v448
        %v451 = vunpack.c.l.s4 1934713408
        %v452 = vunpack.c.0.s8 %v451
        %v453 = vperm.slane %v445, %v452
        %v454 = vrot.slane %v437, 4
        %v455 = vsel %vm294, 0.0, %v454
        %v456 = vrot.slane %v441, 4
        %v457 = vsel %vm294, 0.0, %v456
        %v458 = vrot.slane %v449, 4
        %v459 = vsel %vm294, 0.0, %v458
        %v460 = vrot.slane %v453, 4
        %v461 = vsel %vm294, 0.0, %v460
        %v462 = vrot.slane %v276, 4
        %v463 = vsel %vm294, %v462, %v251
        %v464 = vrot.slane %v251, 4
        %v465 = vsel %vm294, %v276, %v464
        %v467 = vunpack.c.l.s4 1983009808
        %v468 = vunpack.c.0.s8 %v467
        %v469 = vperm.slane %v463, %v468
        %v471 = vunpack.c.l.s4 1983009808
        %v472 = vunpack.c.0.s8 %v471
        %v473 = vperm.slane %v465, %v472
        %v474 = vrot.slane %v288, 4
        %v475 = vsel %vm294, %v474, %v264
        %v476 = vrot.slane %v264, 4
        %v477 = vsel %vm294, %v288, %v476
        %v479 = vunpack.c.l.s4 1983009808
        %v480 = vunpack.c.0.s8 %v479
        %v481 = vperm.slane %v475, %v480
        %v483 = vunpack.c.l.s4 1983009808
        %v484 = vunpack.c.0.s8 %v483
        %v485 = vperm.slane %v477, %v484
        %v486 = vrot.slane %v481, 4
        %v487 = vsel %vm294, %v486, %v469
        %v488 = vrot.slane %v469, 4
        %v489 = vsel %vm294, %v481, %v488
        %v491 = vunpack.c.l.s4 1934713408
        %v492 = vunpack.c.0.s8 %v491
        %v493 = vperm.slane %v487, %v492
        %v495 = vunpack.c.l.s4 1934713408
        %v496 = vunpack.c.0.s8 %v495
        %v497 = vperm.slane %v489, %v496
        %v498 = vrot.slane %v485, 4
        %v499 = vsel %vm294, %v498, %v473
        %v500 = vrot.slane %v473, 4
        %v501 = vsel %vm294, %v485, %v500
        %v503 = vunpack.c.l.s4 1934713408
        %v504 = vunpack.c.0.s8 %v503
        %v505 = vperm.slane %v499, %v504
        %v507 = vunpack.c.l.s4 1934713408
        %v508 = vunpack.c.0.s8 %v507
        %v509 = vperm.slane %v501, %v508
        %v510 = vrot.slane %v493, 4
        %v511 = vsel %vm294, 0.0, %v510
        %v512 = vrot.slane %v497, 4
        %v513 = vsel %vm294, 0.0, %v512
        %v514 = vrot.slane %v505, 4
        %v515 = vsel %vm294, 0.0, %v514
        %v516 = vrot.slane %v509, 4
        %v517 = vsel %vm294, 0.0, %v516
        %vm518 = vcmask 257024
        %v519 = vsel %vm518, %v325, 0.0
        %520 = vadd.xlane.f32.xlu0 %v519
        %v521 = vpop.xlane.xlu0 %520
        %v522 = vsel %vm518, %v343, 0.0
        %523 = vadd.xlane.f32.xlu0 %v522
        %v524 = vpop.xlane.xlu0 %523
        %v525 = vsel %vm518, %v329, 0.0
        %526 = vadd.xlane.f32.xlu0 %v525
        %v527 = vpop.xlane.xlu0 %526
        %v528 = vsel %vm518, %v345, 0.0
        %529 = vadd.xlane.f32.xlu0 %v528
        %v530 = vpop.xlane.xlu0 %529
        %v531 = vsel %vm518, %v337, 0.0
        %532 = vadd.xlane.f32.xlu0 %v531
        %v533 = vpop.xlane.xlu0 %532
        %v534 = vsel %vm518, %v347, 0.0
        %535 = vadd.xlane.f32.xlu0 %v534
        %v536 = vpop.xlane.xlu0 %535
        %v537 = vsel %vm518, %v341, 0.0
        %538 = vadd.xlane.f32.xlu0 %v537
        %v539 = vpop.xlane.xlu0 %538
        %v540 = vsel %vm518, %v349, 0.0
        %541 = vadd.xlane.f32.xlu0 %v540
        %v542 = vpop.xlane.xlu0 %541
        %v543 = vsel %vm518, %v381, 0.0
        %544 = vadd.xlane.f32.xlu0 %v543
        %v545 = vpop.xlane.xlu0 %544
        %v546 = vsel %vm518, %v399, 0.0
        %547 = vadd.xlane.f32.xlu0 %v546
        %v548 = vpop.xlane.xlu0 %547
        %v549 = vsel %vm518, %v385, 0.0
        %550 = vadd.xlane.f32.xlu0 %v549
        %v551 = vpop.xlane.xlu0 %550
        %v552 = vsel %vm518, %v401, 0.0
        %553 = vadd.xlane.f32.xlu0 %v552
        %v554 = vpop.xlane.xlu0 %553
        %v555 = vsel %vm518, %v393, 0.0
        %556 = vadd.xlane.f32.xlu0 %v555
        %v557 = vpop.xlane.xlu0 %556
        %v558 = vsel %vm518, %v403, 0.0
        %559 = vadd.xlane.f32.xlu0 %v558
        %v560 = vpop.xlane.xlu0 %559
        %v561 = vsel %vm518, %v397, 0.0
        %562 = vadd.xlane.f32.xlu0 %v561
        %v563 = vpop.xlane.xlu0 %562
        %v564 = vsel %vm518, %v405, 0.0
        %565 = vadd.xlane.f32.xlu0 %v564
        %v566 = vpop.xlane.xlu0 %565
        %v567 = vsel %vm518, %v437, 0.0
        %568 = vadd.xlane.f32.xlu0 %v567
        %v569 = vpop.xlane.xlu0 %568
        %v570 = vsel %vm518, %v455, 0.0
        %571 = vadd.xlane.f32.xlu0 %v570
        %v572 = vpop.xlane.xlu0 %571
        %v573 = vsel %vm518, %v441, 0.0
        %574 = vadd.xlane.f32.xlu0 %v573
        %v575 = vpop.xlane.xlu0 %574
        %v576 = vsel %vm518, %v457, 0.0
        %577 = vadd.xlane.f32.xlu0 %v576
        %v578 = vpop.xlane.xlu0 %577
        %v579 = vsel %vm518, %v449, 0.0
        %580 = vadd.xlane.f32.xlu0 %v579
        %v581 = vpop.xlane.xlu0 %580
        %v582 = vsel %vm518, %v459, 0.0
        %583 = vadd.xlane.f32.xlu0 %v582
        %v584 = vpop.xlane.xlu0 %583
        %v585 = vsel %vm518, %v453, 0.0
        %586 = vadd.xlane.f32.xlu0 %v585
        %v587 = vpop.xlane.xlu0 %586
        %v588 = vsel %vm518, %v461, 0.0
        %589 = vadd.xlane.f32.xlu0 %v588
        %v590 = vpop.xlane.xlu0 %589
        %v591 = vsel %vm518, %v493, 0.0
        %592 = vadd.xlane.f32.xlu0 %v591
        %v593 = vpop.xlane.xlu0 %592
        %v594 = vsel %vm518, %v511, 0.0
        %595 = vadd.xlane.f32.xlu0 %v594
        %v596 = vpop.xlane.xlu0 %595
        %v597 = vsel %vm518, %v497, 0.0
        %598 = vadd.xlane.f32.xlu0 %v597
        %v599 = vpop.xlane.xlu0 %598
        %v600 = vsel %vm518, %v513, 0.0
        %601 = vadd.xlane.f32.xlu0 %v600
        %v602 = vpop.xlane.xlu0 %601
        %v603 = vsel %vm518, %v505, 0.0
        %604 = vadd.xlane.f32.xlu0 %v603
        %v605 = vpop.xlane.xlu0 %604
        %v606 = vsel %vm518, %v515, 0.0
        %607 = vadd.xlane.f32.xlu0 %v606
        %v608 = vpop.xlane.xlu0 %607
        %v609 = vsel %vm518, %v509, 0.0
        %610 = vadd.xlane.f32.xlu0 %v609
        %v611 = vpop.xlane.xlu0 %610
        %v612 = vsel %vm518, %v517, 0.0
        %613 = vadd.xlane.f32.xlu0 %v612
        %v614 = vpop.xlane.xlu0 %613
        %v615 = vrcp.pop 32.0
        %v616 = vmul.f32 32.0, %v615
        %v617 = vsub.f32 1.0, %v616
        %v618 = vmul.f32 %v615, %v617
        %v619 = vadd.f32 %v615, %v618
        %vm620 = vweird.f32 %v615
        %v621 = vsel %vm620, %v615, %v619
        %v622 = vmul.f32 %v521, %v621
        %v623 = vmul.f32 %v524, %v621
        %v624 = vmul.f32 %v527, %v621
        %v625 = vmul.f32 %v530, %v621
        %v626 = vmul.f32 %v533, %v621
        %v627 = vmul.f32 %v536, %v621
        %v628 = vmul.f32 %v539, %v621
        %v629 = vmul.f32 %v542, %v621
        %v630 = vmul.f32 %v545, %v621
        %v631 = vmul.f32 %v548, %v621
        %v632 = vmul.f32 %v551, %v621
        %v633 = vmul.f32 %v554, %v621
        %v634 = vmul.f32 %v557, %v621
        %v635 = vmul.f32 %v560, %v621
        %v636 = vmul.f32 %v563, %v621
        %v637 = vmul.f32 %v566, %v621
        %v638 = vmul.f32 %v569, %v621
        %v639 = vmul.f32 %v572, %v621
        %v640 = vmul.f32 %v575, %v621
        %v641 = vmul.f32 %v578, %v621
        %v642 = vmul.f32 %v581, %v621
        %v643 = vmul.f32 %v584, %v621
        %v644 = vmul.f32 %v587, %v621
        %v645 = vmul.f32 %v590, %v621
        %v646 = vmul.f32 %v593, %v621
        %v647 = vmul.f32 %v596, %v621
        %v648 = vmul.f32 %v599, %v621
        %v649 = vmul.f32 %v602, %v621
        %v650 = vmul.f32 %v605, %v621
        %v651 = vmul.f32 %v608, %v621
        %v652 = vmul.f32 %v611, %v621
        %v653 = vmul.f32 %v614, %v621
        %v654 = vsub.f32 %v325, %v622
        %v655 = vsub.f32 %v343, %v623
        %v656 = vsub.f32 %v329, %v624
        %v657 = vsub.f32 %v345, %v625
        %v658 = vsub.f32 %v337, %v626
        %v659 = vsub.f32 %v347, %v627
        %v660 = vsub.f32 %v341, %v628
        %v661 = vsub.f32 %v349, %v629
        %v662 = vsub.f32 %v381, %v630
        %v663 = vsub.f32 %v399, %v631
        %v664 = vsub.f32 %v385, %v632
        %v665 = vsub.f32 %v401, %v633
        %v666 = vsub.f32 %v393, %v634
        %v667 = vsub.f32 %v403, %v635
        %v668 = vsub.f32 %v397, %v636
        %v669 = vsub.f32 %v405, %v637
        %v670 = vsub.f32 %v437, %v638
        %v671 = vsub.f32 %v455, %v639
        %v672 = vsub.f32 %v441, %v640
        %v673 = vsub.f32 %v457, %v641
        %v674 = vsub.f32 %v449, %v642
        %v675 = vsub.f32 %v459, %v643
        %v676 = vsub.f32 %v453, %v644
        %v677 = vsub.f32 %v461, %v645
        %v678 = vsub.f32 %v493, %v646
        %v679 = vsub.f32 %v511, %v647
        %v680 = vsub.f32 %v497, %v648
        %v681 = vsub.f32 %v513, %v649
        %v682 = vsub.f32 %v505, %v650
        %v683 = vsub.f32 %v515, %v651
        %v684 = vsub.f32 %v509, %v652
        %v685 = vsub.f32 %v517, %v653
        %v686 = vmul.f32 %v654, %v654
        %v687 = vmul.f32 %v655, %v655
        %v688 = vmul.f32 %v656, %v656
        %v689 = vmul.f32 %v657, %v657
        %v690 = vmul.f32 %v658, %v658
        %v691 = vmul.f32 %v659, %v659
        %v692 = vmul.f32 %v660, %v660
        %v693 = vmul.f32 %v661, %v661
        %v694 = vmul.f32 %v662, %v662
        %v695 = vmul.f32 %v663, %v663
        %v696 = vmul.f32 %v664, %v664
        %v697 = vmul.f32 %v665, %v665
        %v698 = vmul.f32 %v666, %v666
        %v699 = vmul.f32 %v667, %v667
        %v700 = vmul.f32 %v668, %v668
        %v701 = vmul.f32 %v669, %v669
        %v702 = vmul.f32 %v670, %v670
        %v703 = vmul.f32 %v671, %v671
        %v704 = vmul.f32 %v672, %v672
        %v705 = vmul.f32 %v673, %v673
        %v706 = vmul.f32 %v674, %v674
        %v707 = vmul.f32 %v675, %v675
        %v708 = vmul.f32 %v676, %v676
        %v709 = vmul.f32 %v677, %v677
        %v710 = vmul.f32 %v678, %v678
        %v711 = vmul.f32 %v679, %v679
        %v712 = vmul.f32 %v680, %v680
        %v713 = vmul.f32 %v681, %v681
        %v714 = vmul.f32 %v682, %v682
        %v715 = vmul.f32 %v683, %v683
        %v716 = vmul.f32 %v684, %v684
        %v717 = vmul.f32 %v685, %v685
        %v718 = vsel %vm518, %v686, 0.0
        %719 = vadd.xlane.f32.xlu0 %v718
        %v720 = vpop.xlane.xlu0 %719
        %v721 = vsel %vm518, %v687, 0.0
        %722 = vadd.xlane.f32.xlu0 %v721
        %v723 = vpop.xlane.xlu0 %722
        %v724 = vsel %vm518, %v688, 0.0
        %725 = vadd.xlane.f32.xlu0 %v724
        %v726 = vpop.xlane.xlu0 %725
        %v727 = vsel %vm518, %v689, 0.0
        %728 = vadd.xlane.f32.xlu0 %v727
        %v729 = vpop.xlane.xlu0 %728
        %v730 = vsel %vm518, %v690, 0.0
        %731 = vadd.xlane.f32.xlu0 %v730
        %v732 = vpop.xlane.xlu0 %731
        %v733 = vsel %vm518, %v691, 0.0
        %734 = vadd.xlane.f32.xlu0 %v733
        %v735 = vpop.xlane.xlu0 %734
        %v736 = vsel %vm518, %v692, 0.0
        %737 = vadd.xlane.f32.xlu0 %v736
        %v738 = vpop.xlane.xlu0 %737
        %v739 = vsel %vm518, %v693, 0.0
        %740 = vadd.xlane.f32.xlu0 %v739
        %v741 = vpop.xlane.xlu0 %740
        %v742 = vsel %vm518, %v694, 0.0
        %743 = vadd.xlane.f32.xlu0 %v742
        %v744 = vpop.xlane.xlu0 %743
        %v745 = vsel %vm518, %v695, 0.0
        %746 = vadd.xlane.f32.xlu0 %v745
        %v747 = vpop.xlane.xlu0 %746
        %v748 = vsel %vm518, %v696, 0.0
        %749 = vadd.xlane.f32.xlu0 %v748
        %v750 = vpop.xlane.xlu0 %749
        %v751 = vsel %vm518, %v697, 0.0
        %752 = vadd.xlane.f32.xlu0 %v751
        %v753 = vpop.xlane.xlu0 %752
        %v754 = vsel %vm518, %v698, 0.0
        %755 = vadd.xlane.f32.xlu0 %v754
        %v756 = vpop.xlane.xlu0 %755
        %v757 = vsel %vm518, %v699, 0.0
        %758 = vadd.xlane.f32.xlu0 %v757
        %v759 = vpop.xlane.xlu0 %758
        %v760 = vsel %vm518, %v700, 0.0
        %761 = vadd.xlane.f32.xlu0 %v760
        %v762 = vpop.xlane.xlu0 %761
        %v763 = vsel %vm518, %v701, 0.0
        %764 = vadd.xlane.f32.xlu0 %v763
        %v765 = vpop.xlane.xlu0 %764
        %v766 = vsel %vm518, %v702, 0.0
        %767 = vadd.xlane.f32.xlu0 %v766
        %v768 = vpop.xlane.xlu0 %767
        %v769 = vsel %vm518, %v703, 0.0
        %770 = vadd.xlane.f32.xlu0 %v769
        %v771 = vpop.xlane.xlu0 %770
        %v772 = vsel %vm518, %v704, 0.0
        %773 = vadd.xlane.f32.xlu0 %v772
        %v774 = vpop.xlane.xlu0 %773
        %v775 = vsel %vm518, %v705, 0.0
        %776 = vadd.xlane.f32.xlu0 %v775
        %v777 = vpop.xlane.xlu0 %776
        %v778 = vsel %vm518, %v706, 0.0
        %779 = vadd.xlane.f32.xlu0 %v778
        %v780 = vpop.xlane.xlu0 %779
        %v781 = vsel %vm518, %v707, 0.0
        %782 = vadd.xlane.f32.xlu0 %v781
        %v783 = vpop.xlane.xlu0 %782
        %v784 = vsel %vm518, %v708, 0.0
        %785 = vadd.xlane.f32.xlu0 %v784
        %v786 = vpop.xlane.xlu0 %785
        %v787 = vsel %vm518, %v709, 0.0
        %788 = vadd.xlane.f32.xlu0 %v787
        %v789 = vpop.xlane.xlu0 %788
        %v790 = vsel %vm518, %v710, 0.0
        %791 = vadd.xlane.f32.xlu0 %v790
        %v792 = vpop.xlane.xlu0 %791
        %v793 = vsel %vm518, %v711, 0.0
        %794 = vadd.xlane.f32.xlu0 %v793
        %v795 = vpop.xlane.xlu0 %794
        %v796 = vsel %vm518, %v712, 0.0
        %797 = vadd.xlane.f32.xlu0 %v796
        %v798 = vpop.xlane.xlu0 %797
        %v799 = vsel %vm518, %v713, 0.0
        %800 = vadd.xlane.f32.xlu0 %v799
        %v801 = vpop.xlane.xlu0 %800
        %v802 = vsel %vm518, %v714, 0.0
        %803 = vadd.xlane.f32.xlu0 %v802
        %v804 = vpop.xlane.xlu0 %803
        %v805 = vsel %vm518, %v715, 0.0
        %806 = vadd.xlane.f32.xlu0 %v805
        %v807 = vpop.xlane.xlu0 %806
        %v808 = vsel %vm518, %v716, 0.0
        %809 = vadd.xlane.f32.xlu0 %v808
        %v810 = vpop.xlane.xlu0 %809
        %v811 = vsel %vm518, %v717, 0.0
        %812 = vadd.xlane.f32.xlu0 %v811
        %v813 = vpop.xlane.xlu0 %812
        %v814 = vmul.f32 %v720, %v621
        %v815 = vmul.f32 %v723, %v621
        %v816 = vmul.f32 %v726, %v621
        %v817 = vmul.f32 %v729, %v621
        %v818 = vmul.f32 %v732, %v621
        %v819 = vmul.f32 %v735, %v621
        %v820 = vmul.f32 %v738, %v621
        %v821 = vmul.f32 %v741, %v621
        %v822 = vmul.f32 %v744, %v621
        %v823 = vmul.f32 %v747, %v621
        %v824 = vmul.f32 %v750, %v621
        %v825 = vmul.f32 %v753, %v621
        %v826 = vmul.f32 %v756, %v621
        %v827 = vmul.f32 %v759, %v621
        %v828 = vmul.f32 %v762, %v621
        %v829 = vmul.f32 %v765, %v621
        %v830 = vmul.f32 %v768, %v621
        %v831 = vmul.f32 %v771, %v621
        %v832 = vmul.f32 %v774, %v621
        %v833 = vmul.f32 %v777, %v621
        %v834 = vmul.f32 %v780, %v621
        %v835 = vmul.f32 %v783, %v621
        %v836 = vmul.f32 %v786, %v621
        %v837 = vmul.f32 %v789, %v621
        %v838 = vmul.f32 %v792, %v621
        %v839 = vmul.f32 %v795, %v621
        %v840 = vmul.f32 %v798, %v621
        %v841 = vmul.f32 %v801, %v621
        %v842 = vmul.f32 %v804, %v621
        %v843 = vmul.f32 %v807, %v621
        %v844 = vmul.f32 %v810, %v621
        %v845 = vmul.f32 %v813, %v621
        %v846 = vadd.f32 %v814, 1e-05
        %v847 = vadd.f32 %v815, 1e-05
        %v848 = vadd.f32 %v816, 1e-05
        %v849 = vadd.f32 %v817, 1e-05
        %v850 = vadd.f32 %v818, 1e-05
        %v851 = vadd.f32 %v819, 1e-05
        %v852 = vadd.f32 %v820, 1e-05
        %v853 = vadd.f32 %v821, 1e-05
        %v854 = vadd.f32 %v822, 1e-05
        %v855 = vadd.f32 %v823, 1e-05
        %v856 = vadd.f32 %v824, 1e-05
        %v857 = vadd.f32 %v825, 1e-05
        %v858 = vadd.f32 %v826, 1e-05
        %v859 = vadd.f32 %v827, 1e-05
        %v860 = vadd.f32 %v828, 1e-05
        %v861 = vadd.f32 %v829, 1e-05
        %v862 = vadd.f32 %v830, 1e-05
        %v863 = vadd.f32 %v831, 1e-05
        %v864 = vadd.f32 %v832, 1e-05
        %v865 = vadd.f32 %v833, 1e-05
        %v866 = vadd.f32 %v834, 1e-05
        %v867 = vadd.f32 %v835, 1e-05
        %v868 = vadd.f32 %v836, 1e-05
        %v869 = vadd.f32 %v837, 1e-05
        %v870 = vadd.f32 %v838, 1e-05
        %v871 = vadd.f32 %v839, 1e-05
        %v872 = vadd.f32 %v840, 1e-05
        %v873 = vadd.f32 %v841, 1e-05
        %v874 = vadd.f32 %v842, 1e-05
        %v875 = vadd.f32 %v843, 1e-05
        %v876 = vadd.f32 %v844, 1e-05
        %v877 = vadd.f32 %v845, 1e-05
        %v878 = vrsqrt.pop %v846
        %v879 = vmul.f32 %v878, %v846
        %v880 = vmul.f32 %v879, %v878
        %v881 = vmul.f32 0.5, %v880
        %v882 = vsub.f32 1.5, %v881
        %v883 = vmul.f32 %v878, %v882
        %vm884 = vweird.f32 %v846
        %vm885 = vweird.f32 %v878
        %vm886 = vmor %vm884, %vm885
        %v887 = vsel %vm886, %v878, %v883
        %v888 = vrsqrt.pop %v847
        %v889 = vmul.f32 %v888, %v847
        %v890 = vmul.f32 %v889, %v888
        %v891 = vmul.f32 0.5, %v890
        %v892 = vsub.f32 1.5, %v891
        %v893 = vmul.f32 %v888, %v892
        %vm894 = vweird.f32 %v847
        %vm895 = vweird.f32 %v888
        %vm896 = vmor %vm894, %vm895
        %v897 = vsel %vm896, %v888, %v893
        %v898 = vrsqrt.pop %v848
        %v899 = vmul.f32 %v898, %v848
        %v900 = vmul.f32 %v899, %v898
        %v901 = vmul.f32 0.5, %v900
        %v902 = vsub.f32 1.5, %v901
        %v903 = vmul.f32 %v898, %v902
        %vm904 = vweird.f32 %v848
        %vm905 = vweird.f32 %v898
        %vm906 = vmor %vm904, %vm905
        %v907 = vsel %vm906, %v898, %v903
        %v908 = vrsqrt.pop %v849
        %v909 = vmul.f32 %v908, %v849
        %v910 = vmul.f32 %v909, %v908
        %v911 = vmul.f32 0.5, %v910
        %v912 = vsub.f32 1.5, %v911
        %v913 = vmul.f32 %v908, %v912
        %vm914 = vweird.f32 %v849
        %vm915 = vweird.f32 %v908
        %vm916 = vmor %vm914, %vm915
        %v917 = vsel %vm916, %v908, %v913
        %v918 = vrsqrt.pop %v850
        %v919 = vmul.f32 %v918, %v850
        %v920 = vmul.f32 %v919, %v918
        %v921 = vmul.f32 0.5, %v920
        %v922 = vsub.f32 1.5, %v921
        %v923 = vmul.f32 %v918, %v922
        %vm924 = vweird.f32 %v850
        %vm925 = vweird.f32 %v918
        %vm926 = vmor %vm924, %vm925
        %v927 = vsel %vm926, %v918, %v923
        %v928 = vrsqrt.pop %v851
        %v929 = vmul.f32 %v928, %v851
        %v930 = vmul.f32 %v929, %v928
        %v931 = vmul.f32 0.5, %v930
        %v932 = vsub.f32 1.5, %v931
        %v933 = vmul.f32 %v928, %v932
        %vm934 = vweird.f32 %v851
        %vm935 = vweird.f32 %v928
        %vm936 = vmor %vm934, %vm935
        %v937 = vsel %vm936, %v928, %v933
        %v938 = vrsqrt.pop %v852
        %v939 = vmul.f32 %v938, %v852
        %v940 = vmul.f32 %v939, %v938
        %v941 = vmul.f32 0.5, %v940
        %v942 = vsub.f32 1.5, %v941
        %v943 = vmul.f32 %v938, %v942
        %vm944 = vweird.f32 %v852
        %vm945 = vweird.f32 %v938
        %vm946 = vmor %vm944, %vm945
        %v947 = vsel %vm946, %v938, %v943
        %v948 = vrsqrt.pop %v853
        %v949 = vmul.f32 %v948, %v853
        %v950 = vmul.f32 %v949, %v948
        %v951 = vmul.f32 0.5, %v950
        %v952 = vsub.f32 1.5, %v951
        %v953 = vmul.f32 %v948, %v952
        %vm954 = vweird.f32 %v853
        %vm955 = vweird.f32 %v948
        %vm956 = vmor %vm954, %vm955
        %v957 = vsel %vm956, %v948, %v953
        %v958 = vrsqrt.pop %v854
        %v959 = vmul.f32 %v958, %v854
        %v960 = vmul.f32 %v959, %v958
        %v961 = vmul.f32 0.5, %v960
        %v962 = vsub.f32 1.5, %v961
        %v963 = vmul.f32 %v958, %v962
        %vm964 = vweird.f32 %v854
        %vm965 = vweird.f32 %v958
        %vm966 = vmor %vm964, %vm965
        %v967 = vsel %vm966, %v958, %v963
        %v968 = vrsqrt.pop %v855
        %v969 = vmul.f32 %v968, %v855
        %v970 = vmul.f32 %v969, %v968
        %v971 = vmul.f32 0.5, %v970
        %v972 = vsub.f32 1.5, %v971
        %v973 = vmul.f32 %v968, %v972
        %vm974 = vweird.f32 %v855
        %vm975 = vweird.f32 %v968
        %vm976 = vmor %vm974, %vm975
        %v977 = vsel %vm976, %v968, %v973
        %v978 = vrsqrt.pop %v856
        %v979 = vmul.f32 %v978, %v856
        %v980 = vmul.f32 %v979, %v978
        %v981 = vmul.f32 0.5, %v980
        %v982 = vsub.f32 1.5, %v981
        %v983 = vmul.f32 %v978, %v982
        %vm984 = vweird.f32 %v856
        %vm985 = vweird.f32 %v978
        %vm986 = vmor %vm984, %vm985
        %v987 = vsel %vm986, %v978, %v983
        %v988 = vrsqrt.pop %v857
        %v989 = vmul.f32 %v988, %v857
        %v990 = vmul.f32 %v989, %v988
        %v991 = vmul.f32 0.5, %v990
        %v992 = vsub.f32 1.5, %v991
        %v993 = vmul.f32 %v988, %v992
        %vm994 = vweird.f32 %v857
        %vm995 = vweird.f32 %v988
        %vm996 = vmor %vm994, %vm995
        %v997 = vsel %vm996, %v988, %v993
        %v998 = vrsqrt.pop %v858
        %v999 = vmul.f32 %v998, %v858
        %v1000 = vmul.f32 %v999, %v998
        %v1001 = vmul.f32 0.5, %v1000
        %v1002 = vsub.f32 1.5, %v1001
        %v1003 = vmul.f32 %v998, %v1002
        %vm1004 = vweird.f32 %v858
        %vm1005 = vweird.f32 %v998
        %vm1006 = vmor %vm1004, %vm1005
        %v1007 = vsel %vm1006, %v998, %v1003
        %v1008 = vrsqrt.pop %v859
        %v1009 = vmul.f32 %v1008, %v859
        %v1010 = vmul.f32 %v1009, %v1008
        %v1011 = vmul.f32 0.5, %v1010
        %v1012 = vsub.f32 1.5, %v1011
        %v1013 = vmul.f32 %v1008, %v1012
        %vm1014 = vweird.f32 %v859
        %vm1015 = vweird.f32 %v1008
        %vm1016 = vmor %vm1014, %vm1015
        %v1017 = vsel %vm1016, %v1008, %v1013
        %v1018 = vrsqrt.pop %v860
        %v1019 = vmul.f32 %v1018, %v860
        %v1020 = vmul.f32 %v1019, %v1018
        %v1021 = vmul.f32 0.5, %v1020
        %v1022 = vsub.f32 1.5, %v1021
        %v1023 = vmul.f32 %v1018, %v1022
        %vm1024 = vweird.f32 %v860
        %vm1025 = vweird.f32 %v1018
        %vm1026 = vmor %vm1024, %vm1025
        %v1027 = vsel %vm1026, %v1018, %v1023
        %v1028 = vrsqrt.pop %v861
        %v1029 = vmul.f32 %v1028, %v861
        %v1030 = vmul.f32 %v1029, %v1028
        %v1031 = vmul.f32 0.5, %v1030
        %v1032 = vsub.f32 1.5, %v1031
        %v1033 = vmul.f32 %v1028, %v1032
        %vm1034 = vweird.f32 %v861
        %vm1035 = vweird.f32 %v1028
        %vm1036 = vmor %vm1034, %vm1035
        %v1037 = vsel %vm1036, %v1028, %v1033
        %v1038 = vrsqrt.pop %v862
        %v1039 = vmul.f32 %v1038, %v862
        %v1040 = vmul.f32 %v1039, %v1038
        %v1041 = vmul.f32 0.5, %v1040
        %v1042 = vsub.f32 1.5, %v1041
        %v1043 = vmul.f32 %v1038, %v1042
        %vm1044 = vweird.f32 %v862
        %vm1045 = vweird.f32 %v1038
        %vm1046 = vmor %vm1044, %vm1045
        %v1047 = vsel %vm1046, %v1038, %v1043
        %v1048 = vrsqrt.pop %v863
        %v1049 = vmul.f32 %v1048, %v863
        %v1050 = vmul.f32 %v1049, %v1048
        %v1051 = vmul.f32 0.5, %v1050
        %v1052 = vsub.f32 1.5, %v1051
        %v1053 = vmul.f32 %v1048, %v1052
        %vm1054 = vweird.f32 %v863
        %vm1055 = vweird.f32 %v1048
        %vm1056 = vmor %vm1054, %vm1055
        %v1057 = vsel %vm1056, %v1048, %v1053
        %v1058 = vrsqrt.pop %v864
        %v1059 = vmul.f32 %v1058, %v864
        %v1060 = vmul.f32 %v1059, %v1058
        %v1061 = vmul.f32 0.5, %v1060
        %v1062 = vsub.f32 1.5, %v1061
        %v1063 = vmul.f32 %v1058, %v1062
        %vm1064 = vweird.f32 %v864
        %vm1065 = vweird.f32 %v1058
        %vm1066 = vmor %vm1064, %vm1065
        %v1067 = vsel %vm1066, %v1058, %v1063
        %v1068 = vrsqrt.pop %v865
        %v1069 = vmul.f32 %v1068, %v865
        %v1070 = vmul.f32 %v1069, %v1068
        %v1071 = vmul.f32 0.5, %v1070
        %v1072 = vsub.f32 1.5, %v1071
        %v1073 = vmul.f32 %v1068, %v1072
        %vm1074 = vweird.f32 %v865
        %vm1075 = vweird.f32 %v1068
        %vm1076 = vmor %vm1074, %vm1075
        %v1077 = vsel %vm1076, %v1068, %v1073
        %v1078 = vrsqrt.pop %v866
        %v1079 = vmul.f32 %v1078, %v866
        %v1080 = vmul.f32 %v1079, %v1078
        %v1081 = vmul.f32 0.5, %v1080
        %v1082 = vsub.f32 1.5, %v1081
        %v1083 = vmul.f32 %v1078, %v1082
        %vm1084 = vweird.f32 %v866
        %vm1085 = vweird.f32 %v1078
        %vm1086 = vmor %vm1084, %vm1085
        %v1087 = vsel %vm1086, %v1078, %v1083
        %v1088 = vrsqrt.pop %v867
        %v1089 = vmul.f32 %v1088, %v867
        %v1090 = vmul.f32 %v1089, %v1088
        %v1091 = vmul.f32 0.5, %v1090
        %v1092 = vsub.f32 1.5, %v1091
        %v1093 = vmul.f32 %v1088, %v1092
        %vm1094 = vweird.f32 %v867
        %vm1095 = vweird.f32 %v1088
        %vm1096 = vmor %vm1094, %vm1095
        %v1097 = vsel %vm1096, %v1088, %v1093
        %v1098 = vrsqrt.pop %v868
        %v1099 = vmul.f32 %v1098, %v868
        %v1100 = vmul.f32 %v1099, %v1098
        %v1101 = vmul.f32 0.5, %v1100
        %v1102 = vsub.f32 1.5, %v1101
        %v1103 = vmul.f32 %v1098, %v1102
        %vm1104 = vweird.f32 %v868
        %vm1105 = vweird.f32 %v1098
        %vm1106 = vmor %vm1104, %vm1105
        %v1107 = vsel %vm1106, %v1098, %v1103
        %v1108 = vrsqrt.pop %v869
        %v1109 = vmul.f32 %v1108, %v869
        %v1110 = vmul.f32 %v1109, %v1108
        %v1111 = vmul.f32 0.5, %v1110
        %v1112 = vsub.f32 1.5, %v1111
        %v1113 = vmul.f32 %v1108, %v1112
        %vm1114 = vweird.f32 %v869
        %vm1115 = vweird.f32 %v1108
        %vm1116 = vmor %vm1114, %vm1115
        %v1117 = vsel %vm1116, %v1108, %v1113
        %v1118 = vrsqrt.pop %v870
        %v1119 = vmul.f32 %v1118, %v870
        %v1120 = vmul.f32 %v1119, %v1118
        %v1121 = vmul.f32 0.5, %v1120
        %v1122 = vsub.f32 1.5, %v1121
        %v1123 = vmul.f32 %v1118, %v1122
        %vm1124 = vweird.f32 %v870
        %vm1125 = vweird.f32 %v1118
        %vm1126 = vmor %vm1124, %vm1125
        %v1127 = vsel %vm1126, %v1118, %v1123
        %v1128 = vrsqrt.pop %v871
        %v1129 = vmul.f32 %v1128, %v871
        %v1130 = vmul.f32 %v1129, %v1128
        %v1131 = vmul.f32 0.5, %v1130
        %v1132 = vsub.f32 1.5, %v1131
        %v1133 = vmul.f32 %v1128, %v1132
        %vm1134 = vweird.f32 %v871
        %vm1135 = vweird.f32 %v1128
        %vm1136 = vmor %vm1134, %vm1135
        %v1137 = vsel %vm1136, %v1128, %v1133
        %v1138 = vrsqrt.pop %v872
        %v1139 = vmul.f32 %v1138, %v872
        %v1140 = vmul.f32 %v1139, %v1138
        %v1141 = vmul.f32 0.5, %v1140
        %v1142 = vsub.f32 1.5, %v1141
        %v1143 = vmul.f32 %v1138, %v1142
        %vm1144 = vweird.f32 %v872
        %vm1145 = vweird.f32 %v1138
        %vm1146 = vmor %vm1144, %vm1145
        %v1147 = vsel %vm1146, %v1138, %v1143
        %v1148 = vrsqrt.pop %v873
        %v1149 = vmul.f32 %v1148, %v873
        %v1150 = vmul.f32 %v1149, %v1148
        %v1151 = vmul.f32 0.5, %v1150
        %v1152 = vsub.f32 1.5, %v1151
        %v1153 = vmul.f32 %v1148, %v1152
        %vm1154 = vweird.f32 %v873
        %vm1155 = vweird.f32 %v1148
        %vm1156 = vmor %vm1154, %vm1155
        %v1157 = vsel %vm1156, %v1148, %v1153
        %v1158 = vrsqrt.pop %v874
        %v1159 = vmul.f32 %v1158, %v874
        %v1160 = vmul.f32 %v1159, %v1158
        %v1161 = vmul.f32 0.5, %v1160
        %v1162 = vsub.f32 1.5, %v1161
        %v1163 = vmul.f32 %v1158, %v1162
        %vm1164 = vweird.f32 %v874
        %vm1165 = vweird.f32 %v1158
        %vm1166 = vmor %vm1164, %vm1165
        %v1167 = vsel %vm1166, %v1158, %v1163
        %v1168 = vrsqrt.pop %v875
        %v1169 = vmul.f32 %v1168, %v875
        %v1170 = vmul.f32 %v1169, %v1168
        %v1171 = vmul.f32 0.5, %v1170
        %v1172 = vsub.f32 1.5, %v1171
        %v1173 = vmul.f32 %v1168, %v1172
        %vm1174 = vweird.f32 %v875
        %vm1175 = vweird.f32 %v1168
        %vm1176 = vmor %vm1174, %vm1175
        %v1177 = vsel %vm1176, %v1168, %v1173
        %v1178 = vrsqrt.pop %v876
        %v1179 = vmul.f32 %v1178, %v876
        %v1180 = vmul.f32 %v1179, %v1178
        %v1181 = vmul.f32 0.5, %v1180
        %v1182 = vsub.f32 1.5, %v1181
        %v1183 = vmul.f32 %v1178, %v1182
        %vm1184 = vweird.f32 %v876
        %vm1185 = vweird.f32 %v1178
        %vm1186 = vmor %vm1184, %vm1185
        %v1187 = vsel %vm1186, %v1178, %v1183
        %v1188 = vrsqrt.pop %v877
        %v1189 = vmul.f32 %v1188, %v877
        %v1190 = vmul.f32 %v1189, %v1188
        %v1191 = vmul.f32 0.5, %v1190
        %v1192 = vsub.f32 1.5, %v1191
        %v1193 = vmul.f32 %v1188, %v1192
        %vm1194 = vweird.f32 %v877
        %vm1195 = vweird.f32 %v1188
        %vm1196 = vmor %vm1194, %vm1195
        %v1197 = vsel %vm1196, %v1188, %v1193
        %v1198 = vmul.f32 %v654, %v887
        %v1199 = vmul.f32 %v655, %v897
        %v1200 = vmul.f32 %v656, %v907
        %v1201 = vmul.f32 %v657, %v917
        %v1202 = vmul.f32 %v658, %v927
        %v1203 = vmul.f32 %v659, %v937
        %v1204 = vmul.f32 %v660, %v947
        %v1205 = vmul.f32 %v661, %v957
        %v1206 = vmul.f32 %v662, %v967
        %v1207 = vmul.f32 %v663, %v977
        %v1208 = vmul.f32 %v664, %v987
        %v1209 = vmul.f32 %v665, %v997
        %v1210 = vmul.f32 %v666, %v1007
        %v1211 = vmul.f32 %v667, %v1017
        %v1212 = vmul.f32 %v668, %v1027
        %v1213 = vmul.f32 %v669, %v1037
        %v1214 = vmul.f32 %v670, %v1047
        %v1215 = vmul.f32 %v671, %v1057
        %v1216 = vmul.f32 %v672, %v1067
        %v1217 = vmul.f32 %v673, %v1077
        %v1218 = vmul.f32 %v674, %v1087
        %v1219 = vmul.f32 %v675, %v1097
        %v1220 = vmul.f32 %v676, %v1107
        %v1221 = vmul.f32 %v677, %v1117
        %v1222 = vmul.f32 %v678, %v1127
        %v1223 = vmul.f32 %v679, %v1137
        %v1224 = vmul.f32 %v680, %v1147
        %v1225 = vmul.f32 %v681, %v1157
        %v1226 = vmul.f32 %v682, %v1167
        %v1227 = vmul.f32 %v683, %v1177
        %v1228 = vmul.f32 %v684, %v1187
        %v1229 = vmul.f32 %v685, %v1197
        %v1230 = vrot.slane %v1200, 4
        %v1231 = vsel %vm294, %v1230, %v1198
        %v1233 = vunpack.c.l.s4 1983009808
        %v1234 = vunpack.c.0.s8 %v1233
        %v1235 = vperm.slane %v1231, %v1234
        %v1236 = vrot.slane %v1201, 4
        %v1237 = vsel %vm294, %v1236, %v1199
        %v1239 = vunpack.c.l.s4 1983009808
        %v1240 = vunpack.c.0.s8 %v1239
        %v1241 = vperm.slane %v1237, %v1240
        %v1242 = vrot.slane %v1204, 4
        %v1243 = vsel %vm294, %v1242, %v1202
        %v1245 = vunpack.c.l.s4 1983009808
        %v1246 = vunpack.c.0.s8 %v1245
        %v1247 = vperm.slane %v1243, %v1246
        %v1248 = vrot.slane %v1205, 4
        %v1249 = vsel %vm294, %v1248, %v1203
        %v1251 = vunpack.c.l.s4 1983009808
        %v1252 = vunpack.c.0.s8 %v1251
        %v1253 = vperm.slane %v1249, %v1252
        %v1254 = vrot.slane %v1241, 4
        %v1255 = vsel %vm294, %v1254, %v1235
        %v1256 = vrot.slane %v1235, 4
        %v1257 = vsel %vm294, %v1241, %v1256
        %v1259 = vunpack.c.l.s4 1934713408
        %v1260 = vunpack.c.0.s8 %v1259
        %v1261 = vperm.slane %v1255, %v1260
        %v1263 = vunpack.c.l.s4 1934713408
        %v1264 = vunpack.c.0.s8 %v1263
        %v1265 = vperm.slane %v1257, %v1264
        %v1266 = vrot.slane %v1253, 4
        %v1267 = vsel %vm294, %v1266, %v1247
        %v1268 = vrot.slane %v1247, 4
        %v1269 = vsel %vm294, %v1253, %v1268
        %v1271 = vunpack.c.l.s4 1934713408
        %v1272 = vunpack.c.0.s8 %v1271
        %v1273 = vperm.slane %v1267, %v1272
        %v1275 = vunpack.c.l.s4 1934713408
        %v1276 = vunpack.c.0.s8 %v1275
        %v1277 = vperm.slane %v1269, %v1276
        %v1278 = vrot.slane %v1273, 4
        %v1279 = vsel %vm294, %v1278, %v1261
        %v1280 = vrot.slane %v1261, 4
        %v1281 = vsel %vm294, %v1273, %v1280
        %v1282 = vrot.slane %v1277, 4
        %v1283 = vsel %vm294, %v1282, %v1265
        %v1284 = vrot.slane %v1265, 4
        %v1285 = vsel %vm294, %v1277, %v1284
        %v1286 = vrot.slane %v1208, 4
        %v1287 = vsel %vm294, %v1286, %v1206
        %v1289 = vunpack.c.l.s4 1983009808
        %v1290 = vunpack.c.0.s8 %v1289
        %v1291 = vperm.slane %v1287, %v1290
        %v1292 = vrot.slane %v1209, 4
        %v1293 = vsel %vm294, %v1292, %v1207
        %v1295 = vunpack.c.l.s4 1983009808
        %v1296 = vunpack.c.0.s8 %v1295
        %v1297 = vperm.slane %v1293, %v1296
        %v1298 = vrot.slane %v1212, 4
        %v1299 = vsel %vm294, %v1298, %v1210
        %v1301 = vunpack.c.l.s4 1983009808
        %v1302 = vunpack.c.0.s8 %v1301
        %v1303 = vperm.slane %v1299, %v1302
        %v1304 = vrot.slane %v1213, 4
        %v1305 = vsel %vm294, %v1304, %v1211
        %v1307 = vunpack.c.l.s4 1983009808
        %v1308 = vunpack.c.0.s8 %v1307
        %v1309 = vperm.slane %v1305, %v1308
        %v1310 = vrot.slane %v1297, 4
        %v1311 = vsel %vm294, %v1310, %v1291
        %v1312 = vrot.slane %v1291, 4
        %v1313 = vsel %vm294, %v1297, %v1312
        %v1315 = vunpack.c.l.s4 1934713408
        %v1316 = vunpack.c.0.s8 %v1315
        %v1317 = vperm.slane %v1311, %v1316
        %v1319 = vunpack.c.l.s4 1934713408
        %v1320 = vunpack.c.0.s8 %v1319
        %v1321 = vperm.slane %v1313, %v1320
        %v1322 = vrot.slane %v1309, 4
        %v1323 = vsel %vm294, %v1322, %v1303
        %v1324 = vrot.slane %v1303, 4
        %v1325 = vsel %vm294, %v1309, %v1324
        %v1327 = vunpack.c.l.s4 1934713408
        %v1328 = vunpack.c.0.s8 %v1327
        %v1329 = vperm.slane %v1323, %v1328
        %v1331 = vunpack.c.l.s4 1934713408
        %v1332 = vunpack.c.0.s8 %v1331
        %v1333 = vperm.slane %v1325, %v1332
        %v1334 = vrot.slane %v1329, 4
        %v1335 = vsel %vm294, %v1334, %v1317
        %v1336 = vrot.slane %v1317, 4
        %v1337 = vsel %vm294, %v1329, %v1336
        %v1338 = vrot.slane %v1333, 4
        %v1339 = vsel %vm294, %v1338, %v1321
        %v1340 = vrot.slane %v1321, 4
        %v1341 = vsel %vm294, %v1333, %v1340
        %v1342 = vrot.slane %v1216, 4
        %v1343 = vsel %vm294, %v1342, %v1214
        %v1345 = vunpack.c.l.s4 1983009808
        %v1346 = vunpack.c.0.s8 %v1345
        %v1347 = vperm.slane %v1343, %v1346
        %v1348 = vrot.slane %v1217, 4
        %v1349 = vsel %vm294, %v1348, %v1215
        %v1351 = vunpack.c.l.s4 1983009808
        %v1352 = vunpack.c.0.s8 %v1351
        %v1353 = vperm.slane %v1349, %v1352
        %v1354 = vrot.slane %v1220, 4
        %v1355 = vsel %vm294, %v1354, %v1218
        %v1357 = vunpack.c.l.s4 1983009808
        %v1358 = vunpack.c.0.s8 %v1357
        %v1359 = vperm.slane %v1355, %v1358
        %v1360 = vrot.slane %v1221, 4
        %v1361 = vsel %vm294, %v1360, %v1219
        %v1363 = vunpack.c.l.s4 1983009808
        %v1364 = vunpack.c.0.s8 %v1363
        %v1365 = vperm.slane %v1361, %v1364
        %v1366 = vrot.slane %v1353, 4
        %v1367 = vsel %vm294, %v1366, %v1347
        %v1368 = vrot.slane %v1347, 4
        %v1369 = vsel %vm294, %v1353, %v1368
        %v1371 = vunpack.c.l.s4 1934713408
        %v1372 = vunpack.c.0.s8 %v1371
        %v1373 = vperm.slane %v1367, %v1372
        %v1375 = vunpack.c.l.s4 1934713408
        %v1376 = vunpack.c.0.s8 %v1375
        %v1377 = vperm.slane %v1369, %v1376
        %v1378 = vrot.slane %v1365, 4
        %v1379 = vsel %vm294, %v1378, %v1359
        %v1380 = vrot.slane %v1359, 4
        %v1381 = vsel %vm294, %v1365, %v1380
        %v1383 = vunpack.c.l.s4 1934713408
        %v1384 = vunpack.c.0.s8 %v1383
        %v1385 = vperm.slane %v1379, %v1384
        %v1387 = vunpack.c.l.s4 1934713408
        %v1388 = vunpack.c.0.s8 %v1387
        %v1389 = vperm.slane %v1381, %v1388
        %v1390 = vrot.slane %v1385, 4
        %v1391 = vsel %vm294, %v1390, %v1373
        %v1392 = vrot.slane %v1373, 4
        %v1393 = vsel %vm294, %v1385, %v1392
        %v1394 = vrot.slane %v1389, 4
        %v1395 = vsel %vm294, %v1394, %v1377
        %v1396 = vrot.slane %v1377, 4
        %v1397 = vsel %vm294, %v1389, %v1396
        %v1398 = vrot.slane %v1224, 4
        %v1399 = vsel %vm294, %v1398, %v1222
        %v1401 = vunpack.c.l.s4 1983009808
        %v1402 = vunpack.c.0.s8 %v1401
        %v1403 = vperm.slane %v1399, %v1402
        %v1404 = vrot.slane %v1225, 4
        %v1405 = vsel %vm294, %v1404, %v1223
        %v1407 = vunpack.c.l.s4 1983009808
        %v1408 = vunpack.c.0.s8 %v1407
        %v1409 = vperm.slane %v1405, %v1408
        %v1410 = vrot.slane %v1228, 4
        %v1411 = vsel %vm294, %v1410, %v1226
        %v1413 = vunpack.c.l.s4 1983009808
        %v1414 = vunpack.c.0.s8 %v1413
        %v1415 = vperm.slane %v1411, %v1414
        %v1416 = vrot.slane %v1229, 4
        %v1417 = vsel %vm294, %v1416, %v1227
        %v1419 = vunpack.c.l.s4 1983009808
        %v1420 = vunpack.c.0.s8 %v1419
        %v1421 = vperm.slane %v1417, %v1420
        %v1422 = vrot.slane %v1409, 4
        %v1423 = vsel %vm294, %v1422, %v1403
        %v1424 = vrot.slane %v1403, 4
        %v1425 = vsel %vm294, %v1409, %v1424
        %v1427 = vunpack.c.l.s4 1934713408
        %v1428 = vunpack.c.0.s8 %v1427
        %v1429 = vperm.slane %v1423, %v1428
        %v1431 = vunpack.c.l.s4 1934713408
        %v1432 = vunpack.c.0.s8 %v1431
        %v1433 = vperm.slane %v1425, %v1432
        %v1434 = vrot.slane %v1421, 4
        %v1435 = vsel %vm294, %v1434, %v1415
        %v1436 = vrot.slane %v1415, 4
        %v1437 = vsel %vm294, %v1421, %v1436
        %v1439 = vunpack.c.l.s4 1934713408
        %v1440 = vunpack.c.0.s8 %v1439
        %v1441 = vperm.slane %v1435, %v1440
        %v1443 = vunpack.c.l.s4 1934713408
        %v1444 = vunpack.c.0.s8 %v1443
        %v1445 = vperm.slane %v1437, %v1444
        %v1446 = vrot.slane %v1441, 4
        %v1447 = vsel %vm294, %v1446, %v1429
        %v1448 = vrot.slane %v1429, 4
        %v1449 = vsel %vm294, %v1441, %v1448
        %v1450 = vrot.slane %v1445, 4
        %v1451 = vsel %vm294, %v1450, %v1433
        %v1452 = vrot.slane %v1433, 4
        %v1453 = vsel %vm294, %v1445, %v1452
        %1458 = vrot.lane.b32.xlu0 %v1281, 32
        %v1459 = vpop.permute.xlu0 %1458
        %1460 = vrot.lane.b32.xlu0 %v1337, 32
        %v1461 = vpop.permute.xlu0 %1460
        %1462 = vrot.lane.b32.xlu0 %v1393, 32
        %v1463 = vpop.permute.xlu0 %1462
        %1464 = vrot.lane.b32.xlu0 %v1449, 32
        %v1465 = vpop.permute.xlu0 %1464
        %1474 = vrot.lane.b32.xlu0 %v1283, 64
        %v1475 = vpop.permute.xlu0 %1474
        %1476 = vrot.lane.b32.xlu0 %v1339, 64
        %v1477 = vpop.permute.xlu0 %1476
        %1478 = vrot.lane.b32.xlu0 %v1395, 64
        %v1479 = vpop.permute.xlu0 %1478
        %1480 = vrot.lane.b32.xlu0 %v1451, 64
        %v1481 = vpop.permute.xlu0 %1480
        %1490 = vrot.lane.b32.xlu0 %v1285, 96
        %v1491 = vpop.permute.xlu0 %1490
        %1492 = vrot.lane.b32.xlu0 %v1341, 96
        %v1493 = vpop.permute.xlu0 %1492
        %1494 = vrot.lane.b32.xlu0 %v1397, 96
        %v1495 = vpop.permute.xlu0 %1494
        %1496 = vrot.lane.b32.xlu0 %v1453, 96
        %v1497 = vpop.permute.xlu0 %1496
        %vm1502 = vcmask 261120
        %v1503 = vsel %vm1502, %v1279, %v1459
        %v1504 = vsel %vm1502, %v1335, %v1461
        %v1505 = vsel %vm1502, %v1391, %v1463
        %v1506 = vsel %vm1502, %v1447, %v1465
        %v1507 = vsel %vm211, %v1503, %v1475
        %v1508 = vsel %vm211, %v1504, %v1477
        %v1509 = vsel %vm211, %v1505, %v1479
        %v1510 = vsel %vm211, %v1506, %v1481
        %vm1511 = vcmask 785408
        %v1512 = vsel %vm1511, %v1507, %v1491
        %v1513 = vsel %vm1511, %v1508, %v1493
        %v1514 = vsel %vm1511, %v1509, %v1495
        %v1515 = vsel %vm1511, %v1510, %v1497
        %v1516 = vld [vmem:[%s2] sm:$0x1]
        %v1518 = vperm.slane %v1516, 0
        %v1520 = vmul.f32 %v1512, %v1518
        %v1521 = vmul.f32 %v1513, %v1518
        %v1522 = vmul.f32 %v1514, %v1518
        %v1523 = vmul.f32 %v1515, %v1518
        %v1524 = vld [vmem:[%s3] sm:$0x1]
        %v1526 = vperm.slane %v1524, 0
        %v1528 = vadd.f32 %v1520, %v1526
        %v1529 = vadd.f32 %v1521, %v1526
        %v1530 = vadd.f32 %v1522, %v1526
        %v1531 = vadd.f32 %v1523, %v1526
        %1532 = vst.msk [vmem:[%s191] sm:$0xff] %vm211, %v1528
        %1533 = vst.msk [vmem:[%s191 + $0x10] sm:$0xff] %vm211, %v1529
        %1534 = vst.msk [vmem:[%s191 + $0x20] sm:$0xff] %vm211, %v1530
        %1535 = vst.msk [vmem:[%s191 + $0x30] sm:$0xff] %vm211, %v1531
        %1540 = vrot.lane.b32.xlu0 %v1528, 64
        %v1541 = vpop.permute.xlu0 %1540
        %1542 = vrot.lane.b32.xlu0 %v1529, 64
        %v1543 = vpop.permute.xlu0 %1542
        %1544 = vrot.lane.b32.xlu0 %v1530, 64
        %v1545 = vpop.permute.xlu0 %1544
        %1546 = vrot.lane.b32.xlu0 %v1531, 64
        %v1547 = vpop.permute.xlu0 %1546
        %s1552 = scalar_lea.vmem %s191, 8 [#allocation2]
        %1553 = vst.msk [vmem:[%s1552] sm:$0xff] %vm211, %v1541
        %1554 = vst.msk [vmem:[%s1552 + $0x10] sm:$0xff] %vm211, %v1543
        %1555 = vst.msk [vmem:[%s1552 + $0x20] sm:$0xff] %vm211, %v1545
        %1556 = vst.msk [vmem:[%s1552 + $0x30] sm:$0xff] %vm211, %v1547
        %s1557 = sand.u32 %s115, 1
        %s1558 = scalar_lea.sflag [#allocation3], %s1557
        %s1559 = sand.u32 %s115, 1
        %s1560 = smul.addr %s1559, 64
        %s1561 = scalar_lea.vmem [#allocation2], %s1560
        // Predicated region
        $region37: #{tpu_custom_call.1} parent=35 // pred_check
          %p1562 = pneg %p125
        $region38: #{tpu_custom_call.1} parent=35 // pred_check_branch
          %1564 = sbr.rel (%p1562) target = $region40
        $region39: #{tpu_custom_call.1} parent=35 // pred_region
          %s1565 = smul.u32 4, %s18
          %1567 = vsyncadd %s1558, 0
          %s1568 = smul.addr %s1565, 2
          %s1569 = smul.addr %s1568, 8
          %s1570 = scalar_lea.hbm %s4, %s1569
          %s1571 = sshll.u32 %s1561, 4
          %s1572 = int_to_ptr.vmem [resolvable:$true] %s1571
          %s1573 = sshll.u32 %s1570, 4
          %s1574 = int_to_ptr.hbm [resolvable:$true] %s1573
          %1579 = dma.vmem_to_hbm [thread:$0]  %s1572, 1024, %s1574, %s1558, 128, 128, 8
        $region40: #{tpu_custom_call.1} parent=35 // pred_fallthru
          _
      $region36: #{tpu_custom_call.1} parent=5 // pred_fallthru
        _
      %p1580 = scmp.le.s32.totalorder 2, %s13
      // Predicated region
      $region41: #{tpu_custom_call.1} parent=5 // pred_check
        %p1581 = pneg %p1580
      $region42: #{tpu_custom_call.1} parent=5 // pred_check_branch
        %1583 = sbr.rel (%p1581) target = $region44
      $region43: #{tpu_custom_call.1} parent=5 // pred_region
        %s1584 = ssub.s32 %s13, 2
        // Predicated region
        $region45: #{tpu_custom_call.1} parent=43 // pred_check
          %p1585 = pneg %p131
        $region46: #{tpu_custom_call.1} parent=43 // pred_check_branch
          %1587 = sbr.rel (%p1585) target = $region48
        $region47: #{tpu_custom_call.1} parent=43 // pred_region
          %s1588 = sand.u32 %s116, 1
          %s1589 = scalar_lea.sflag [#allocation3], %s1588
          %s1590 = sand.u32 %s116, 1
          %s1591 = smul.addr %s1590, 64
          %s1592 = scalar_lea.vmem [#allocation2], %s1591
          %1594 = dma.done %s1589, 1024
        $region48: #{tpu_custom_call.1} parent=43 // pred_fallthru
          _
      $region44: #{tpu_custom_call.1} parent=5 // pred_fallthru
        _
    $region6: #{tpu_custom_call.1} parent=1 // loop_footer
      %s17 = sadd.s32 1, %s13
    $region7: #{tpu_custom_call.1} parent=1 // loop_footer_branch
      %12 = sbr.rel target = $region3
    $region8: #{tpu_custom_call.1} parent=1 // loop_exit
      _
    %1595 = vsyncpa [#allocation3], 1
    %s1596 = scalar_lea.sflag [#allocation3], 1
    %1597 = vsyncpa %s1596, 1

// kernel: tpu_custom_call.1
$region0: #{tpu_custom_call.1}
  #allocation0 [shape = 'u32[]', space=smem, size = 0x4, offset = 0x4, fixed_abs, tag = 'smem constant byte address 0x4 - core index']
  #allocation1 [shape = 'u32[72,128]{1,0:T(1,128)}', space=vmem, size = 0x9000, scoped, tag = 'internal scratch']
  %s0 = inlined_call_operand.vmem [shape: f32[128,64], index: 0, kind: input, shape index: {}]
  %s1 = inlined_call_operand.vmem [shape: f32[64,128], index: 1, kind: input, shape index: {}]
  %s2 = inlined_call_operand.vmem [shape: f32[1,128], index: 2, kind: input, shape index: {}]
  %s3 = inlined_call_operand.vmem [shape: f32[1,128], index: 3, kind: input, shape index: {}]
  %s4 = inlined_call_operand.hbm [shape: f32[16,2,8,64], index: 4, kind: output, shape index: {}]
  %s5 = sld [smem:[#allocation0]]
  $region49: #{tpu_custom_call.1} parent=0
    _
  %s7 = ssub.s32 1, %s5
  %s8 = scalar_select 0, %s7, %s5
  $region1: #{tpu_custom_call.1} parent=0
    #allocation2 [shape = 'u8[65536]{0}', space=vmem, size = 0x10000, scoped, tag = 'output window, operand 0']
    #allocation3 [shape = 's32[2]{0}', space=sflag, size = 0x8, scoped, tag = 'scoped memory for tpu_custom_call.1']
    %9 = vsyncpa [#allocation3], 0
    %s10 = scalar_lea.sflag [#allocation3], 1
    %11 = vsyncpa %s10, 0
    loop: start=0, step=1, limit=6
    $region2: #{tpu_custom_call.1} parent=1 // loop_pre_header
      _
    $region3: #{tpu_custom_call.1} parent=1 // loop_header
      %s13 = sphi 0, %s17
      %p14 = scmp.ge.s32.totalorder %s13, 6
      %s23 = sphi 0, %s25
      %s26 = sphi 0, %s23
      %s27 = sphi 0, %s26
      %s43 = sphi 0, %s27
      %s47 = sphi 0, %s47
      %s49 = sphi 0, %s47
      %s50 = sphi 0, %s49
      %s64 = sphi 0, %s50
      %s68 = sphi 0, %s68
      %s70 = sphi 0, %s68
      %s71 = sphi 0, %s70
      %s85 = sphi 0, %s71
      %s89 = sphi 0, %s89
      %s91 = sphi 0, %s89
      %s92 = sphi 0, %s91
      %s106 = sphi 0, %s92
      %s112 = sphi 0, %s114
      %s115 = sphi 0, %s112
      %s116 = sphi 0, %s115
      %s132 = sphi 0, %s116
    $region4: #{tpu_custom_call.1} parent=1 // loop_header_branch
      %16 = sbr.rel (%p14) target = $region8
    $region5: #{tpu_custom_call.1} parent=1 // loop_body
      %s18 = ssub.s32 %s13, 1
      %s19 = ssub.s32 %s13, 2
      %s20 = sadd.s32 %s13, 1
      %s21 = ssub.s32 %s13, %s20
      %p22 = scmp.eq.s32.totalorder %s21, 0
      %s24 = sadd.s32 %s23, 1
      %s25 = scalar_select %p22, %s23, %s24
      %p28 = pneg %p22
      %p29 = scmp.eq.s32.totalorder %s13, 3
      %p30 = por %p28, %p29
      %p31 = scmp.ne.s32.totalorder %s23, %s26
      %p32 = scmp.eq.s32.totalorder %s13, 0
      %p33 = por %p31, %p32
      %p34 = scmp.ne.s32.totalorder %s23, %s26
      %p35 = scmp.eq.s32.totalorder %s18, 3
      %p36 = por %p34, %p35
      %p37 = scmp.ne.s32.totalorder %s26, %s27
      %p38 = scmp.eq.s32.totalorder %s18, 0
      %p39 = por %p37, %p38
      %p40 = scmp.ne.s32.totalorder %s26, %s27
      %p41 = scmp.eq.s32.totalorder %s19, 3
      %p42 = por %p40, %p41
      %p44 = scmp.ne.s32.totalorder %s27, %s43
      %p45 = scmp.eq.s32.totalorder %s19, 0
      %p46 = por %p44, %p45
      %s48 = sadd.s32 %s47, 1
      %p51 = scmp.eq.s32.totalorder %s13, 3
      %p52 = scmp.ne.s32.totalorder %s47, %s49
      %p53 = scmp.eq.s32.totalorder %s13, 0
      %p54 = por %p52, %p53
      %p55 = scmp.ne.s32.totalorder %s47, %s49
      %p56 = scmp.eq.s32.totalorder %s18, 3
      %p57 = por %p55, %p56
      %p58 = scmp.ne.s32.totalorder %s49, %s50
      %p59 = scmp.eq.s32.totalorder %s18, 0
      %p60 = por %p58, %p59
      %p61 = scmp.ne.s32.totalorder %s49, %s50
      %p62 = scmp.eq.s32.totalorder %s19, 3
      %p63 = por %p61, %p62
      %p65 = scmp.ne.s32.totalorder %s50, %s64
      %p66 = scmp.eq.s32.totalorder %s19, 0
      %p67 = por %p65, %p66
      %s69 = sadd.s32 %s68, 1
      %p72 = scmp.eq.s32.totalorder %s13, 3
      %p73 = scmp.ne.s32.totalorder %s68, %s70
      %p74 = scmp.eq.s32.totalorder %s13, 0
      %p75 = por %p73, %p74
      %p76 = scmp.ne.s32.totalorder %s68, %s70
      %p77 = scmp.eq.s32.totalorder %s18, 3
      %p78 = por %p76, %p77
      %p79 = scmp.ne.s32.totalorder %s70, %s71
      %p80 = scmp.eq.s32.totalorder %s18, 0
      %p81 = por %p79, %p80
      %p82 = scmp.ne.s32.totalorder %s70, %s71
      %p83 = scmp.eq.s32.totalorder %s19, 3
      %p84 = por %p82, %p83
      %p86 = scmp.ne.s32.totalorder %s71, %s85
      %p87 = scmp.eq.s32.totalorder %s19, 0
      %p88 = por %p86, %p87
      %s90 = sadd.s32 %s89, 1
      %p93 = scmp.eq.s32.totalorder %s13, 3
      %p94 = scmp.ne.s32.totalorder %s89, %s91
      %p95 = scmp.eq.s32.totalorder %s13, 0
      %p96 = por %p94, %p95
      %p97 = scmp.ne.s32.totalorder %s89, %s91
      %p98 = scmp.eq.s32.totalorder %s18, 3
      %p99 = por %p97, %p98
      %p100 = scmp.ne.s32.totalorder %s91, %s92
      %p101 = scmp.eq.s32.totalorder %s18, 0
      %p102 = por %p100, %p101
      %p103 = scmp.ne.s32.totalorder %s91, %s92
      %p104 = scmp.eq.s32.totalorder %s19, 3
      %p105 = por %p103, %p104
      %p107 = scmp.ne.s32.totalorder %s92, %s106
      %p108 = scmp.eq.s32.totalorder %s19, 0
      %p109 = por %p107, %p108
      %s110 = ssub.s32 %s13, %s20
      %p111 = scmp.eq.s32.totalorder %s110, 0
      %s113 = sadd.s32 %s112, 1
      %s114 = scalar_select %p111, %s112, %s113
      %p117 = pneg %p111
      %p118 = scmp.eq.s32.totalorder %s13, 3
      %p119 = por %p117, %p118
      %p120 = scmp.ne.s32.totalorder %s112, %s115
      %p121 = scmp.eq.s32.totalorder %s13, 0
      %p122 = por %p120, %p121
      %p123 = scmp.ne.s32.totalorder %s112, %s115
      %p124 = scmp.eq.s32.totalorder %s18, 3
      %p125 = por %p123, %p124
      %p126 = scmp.ne.s32.totalorder %s115, %s116
      %p127 = scmp.eq.s32.totalorder %s18, 0
      %p128 = por %p126, %p127
      %p129 = scmp.ne.s32.totalorder %s115, %s116
      %p130 = scmp.eq.s32.totalorder %s19, 3
      %p131 = por %p129, %p130
      %p133 = scmp.ne.s32.totalorder %s116, %s132
      %p134 = scmp.eq.s32.totalorder %s19, 0
      %p135 = por %p133, %p134
      %p136 = scmp.le.s32.totalorder 1, %s13
      %p137 = scmp.lt.s32.totalorder %s13, 5
      %p138 = pnand %p136, %p137
      %p139 = pneg %p138
      // Predicated region
      $region9: #{tpu_custom_call.1} parent=5 // pred_check
        _
      $region10: #{tpu_custom_call.1} parent=5 // pred_check_branch
        %141 = sbr.rel (%p138) target = $region12
      $region11: #{tpu_custom_call.1} parent=5 // pred_region
        %s142 = ssub.s32 %s13, 1
        // Predicated region
        $region13: #{tpu_custom_call.1} parent=11 // pred_check
          %p143 = pneg %p60
        $region14: #{tpu_custom_call.1} parent=11 // pred_check_branch
          %145 = sbr.rel (%p143) target = $region16
        $region15: #{tpu_custom_call.1} parent=11 // pred_region
          _
        $region16: #{tpu_custom_call.1} parent=11 // pred_fallthru
          _
        // Predicated region
        $region17: #{tpu_custom_call.1} parent=11 // pred_check
          %p146 = pneg %p81
        $region18: #{tpu_custom_call.1} parent=11 // pred_check_branch
          %148 = sbr.rel (%p146) target = $region20
        $region19: #{tpu_custom_call.1} parent=11 // pred_region
          _
        $region20: #{tpu_custom_call.1} parent=11 // pred_fallthru
          _
        // Predicated region
        $region21: #{tpu_custom_call.1} parent=11 // pred_check
          %p149 = pneg %p102
        $region22: #{tpu_custom_call.1} parent=11 // pred_check_branch
          %151 = sbr.rel (%p149) target = $region24
        $region23: #{tpu_custom_call.1} parent=11 // pred_region
          _
        $region24: #{tpu_custom_call.1} parent=11 // pred_fallthru
          _
      $region12: #{tpu_custom_call.1} parent=5 // pred_fallthru
        _
      %p152 = scmp.lt.s32.totalorder %s13, 4
      // Predicated region
      $region25: #{tpu_custom_call.1} parent=5 // pred_check
        %p153 = pneg %p152
      $region26: #{tpu_custom_call.1} parent=5 // pred_check_branch
        %155 = sbr.rel (%p153) target = $region28
      $region27: #{tpu_custom_call.1} parent=5 // pred_region
        // Predicated region
        $region29: #{tpu_custom_call.1} parent=27 // pred_check
          %p156 = pneg %p33
        $region30: #{tpu_custom_call.1} parent=27 // pred_check_branch
          %158 = sbr.rel (%p156) target = $region32
        $region31: #{tpu_custom_call.1} parent=27 // pred_region
          %s159 = smul.u32 4, %s13
          %p160 = scmp.lt.s32.totalorder %s159, 15
          %s161 = scalar_select %p160, %s159, 15
          %s162 = smul.addr %s161, 8
          %s163 = scalar_lea.vmem %s0, %s162
          %s164 = smul.u32 4, %s13
        $region32: #{tpu_custom_call.1} parent=27 // pred_fallthru
          _
      $region28: #{tpu_custom_call.1} parent=5 // pred_fallthru
        _
      %p165 = scmp.le.s32.totalorder 1, %s13
      %p166 = scmp.lt.s32.totalorder %s13, 5
      %p167 = pnand %p165, %p166
      %p168 = pneg %p167
      // Predicated region
      $region33: #{tpu_custom_call.1} parent=5 // pred_check
        _
      $region34: #{tpu_custom_call.1} parent=5 // pred_check_branch
        %170 = sbr.rel (%p167) target = $region36
      $region35: #{tpu_custom_call.1} parent=5 // pred_region
        %s171 = ssub.s32 %s13, 1
        %s172 = smul.u32 4, %s18
        %p173 = scmp.lt.s32.totalorder %s172, 15
        %s174 = scalar_select %p173, %s172, 15
        %s175 = smul.addr %s174, 8
        %s176 = scalar_lea.vmem %s0, %s175
        %p177 = pneg %p39
        %p178 = pneg %p36
        %p179 = pneg %p60
        %p180 = pneg %p57
        %p181 = pneg %p81
        %p182 = pneg %p78
        %p183 = pneg %p102
        %p184 = pneg %p99
        %p185 = pneg %p128
        %p186 = pneg %p125
        %s187 = sand.u32 %s115, 1
        %s188 = scalar_lea.sflag [#allocation3], %s187
        %s189 = sand.u32 %s115, 1
        %s190 = smul.addr %s189, 64
        %s191 = scalar_lea.vmem [#allocation2], %s190
        %s192 = smul.u32 4, %s18
        %p193 = scmp.lt.s32.totalorder %s192, 15
        %s194 = scalar_select %p193, %s192, 15
        %s195 = smul.addr %s194, 8
        %s196 = scalar_lea.vmem %s0, %s195
        %s197 = smul.u32 4, %s18
        %s198 = smul.u32 4, %s18
        %v199 = vld [vmem:[%s196] sm:$0xff]
        %v200 = vld [vmem:[%s196 + $0x8] sm:$0xff]
        %v201 = vld [vmem:[%s196 + $0x10] sm:$0xff]
        %v202 = vld [vmem:[%s196 + $0x18] sm:$0xff]
        %v203 = vld [vmem:[%s1] sm:$0xff]
        %v204 = vld [vmem:[%s1 + $0x8] sm:$0xff]
        %v205 = vld [vmem:[%s1 + $0x10] sm:$0xff]
        %v206 = vld [vmem:[%s1 + $0x18] sm:$0xff]
        %v207 = vld [vmem:[%s1 + $0x20] sm:$0xff]
        %v208 = vld [vmem:[%s1 + $0x28] sm:$0xff]
        %v209 = vld [vmem:[%s1 + $0x30] sm:$0xff]
        %v210 = vld [vmem:[%s1 + $0x38] sm:$0xff]
        %vm211 = vcmask 523264
        %v213 = vsel %vm211, %v199, 0
        %v216 = vsel %vm211, %v200, 0
        %v219 = vsel %vm211, %v201, 0
        %v222 = vsel %vm211, %v202, 0
        %224 = vmatpush.msra.mxu0 0.0
        %225 = vmatpush.msra.mxu0 0.0
        %226 = vmatpush.msra.mxu0 0.0
        %227 = vmatpush.msra.mxu0 0.0
        %228 = vmatpush.msra.mxu0 0.0
        %229 = vmatpush.msra.mxu0 0.0
        %230 = vmatpush.msra.mxu0 0.0
        %231 = vmatpush.msra.mxu0 0.0
        %232 = vmatpush.msra.mxu0 %v210
        %233 = vmatpush.msra.mxu0 %v209
        %234 = vmatpush.msra.mxu0 %v208
        %235 = vmatpush.msra.mxu0 %v207
        %236 = vmatpush.msra.mxu0 %v206
        %237 = vmatpush.msra.mxu0 %v205
        %238 = vmatpush.msra.mxu0 %v204
        %239 = vmatpush.msra.mxu0 %v203
        %240 = vmatmul.f32.gmra.mxu0 %v213
        %v241 = vpop.f32.mrf.mxu0
        %v242 = vadd.f32 0.0, %v241
        %243 = vmatmul.f32.gmra.mxu0 %v216
        %v244 = vpop.f32.mrf.mxu0
        %v245 = vadd.f32 0.0, %v244
        %246 = vmatmul.f32.gmra.mxu0 %v219
        %v247 = vpop.f32.mrf.mxu0
        %v248 = vadd.f32 0.0, %v247
        %249 = vmatmul.f32.gmra.mxu0 %v222
        %v250 = vpop.f32.mrf.mxu0
        %v251 = vadd.f32 0.0, %v250
        %252 = vdwg.mxu0
        %257 = vrot.lane.b32.xlu0 %v242, 96
        %v258 = vpop.permute.xlu0 %257
        %259 = vrot.lane.b32.xlu0 %v245, 96
        %v260 = vpop.permute.xlu0 %259
        %261 = vrot.lane.b32.xlu0 %v248, 96
        %v262 = vpop.permute.xlu0 %261
        %263 = vrot.lane.b32.xlu0 %v251, 96
        %v264 = vpop.permute.xlu0 %263
        %269 = vrot.lane.b32.xlu0 %v242, 64
        %v270 = vpop.permute.xlu0 %269
        %271 = vrot.lane.b32.xlu0 %v245, 64
        %v272 = vpop.permute.xlu0 %271
        %273 = vrot.lane.b32.xlu0 %v248, 64
        %v274 = vpop.permute.xlu0 %273
        %275 = vrot.lane.b32.xlu0 %v251, 64
        %v276 = vpop.permute.xlu0 %275
        %281 = vrot.lane.b32.xlu0 %v242, 32
        %v282 = vpop.permute.xlu0 %281
        %283 = vrot.lane.b32.xlu0 %v245, 32
        %v284 = vpop.permute.xlu0 %283
        %285 = vrot.lane.b32.xlu0 %v248, 32
        %v286 = vpop.permute.xlu0 %285
        %287 = vrot.lane.b32.xlu0 %v251, 32
        %v288 = vpop.permute.xlu0 %287
        %v293 = vrot.slane %v270, 4
        %vm294 = vcmask 1047556
        %v295 = vsel %vm294, %v293, %v242
        %v296 = vrot.slane %v242, 4
        %v297 = vsel %vm294, %v270, %v296
        %v299 = vunpack.c.l.s4 1983009808
        %v300 = vunpack.c.0.s8 %v299
        %v301 = vperm.slane %v295, %v300
        %v303 = vunpack.c.l.s4 1983009808
        %v304 = vunpack.c.0.s8 %v303
        %v305 = vperm.slane %v297, %v304
        %v306 = vrot.slane %v282, 4
        %v307 = vsel %vm294, %v306, %v258
        %v308 = vrot.slane %v258, 4
        %v309 = vsel %vm294, %v282, %v308
        %v311 = vunpack.c.l.s4 1983009808
        %v312 = vunpack.c.0.s8 %v311
        %v313 = vperm.slane %v307, %v312
        %v315 = vunpack.c.l.s4 1983009808
        %v316 = vunpack.c.0.s8 %v315
        %v317 = vperm.slane %v309, %v316
        %v318 = vrot.slane %v313, 4
        %v319 = vsel %vm294, %v318, %v301
        %v320 = vrot.slane %v301, 4
        %v321 = vsel %vm294, %v313, %v320
        %v323 = vunpack.c.l.s4 1934713408
        %v324 = vunpack.c.0.s8 %v323
        %v325 = vperm.slane %v319, %v324
        %v327 = vunpack.c.l.s4 1934713408
        %v328 = vunpack.c.0.s8 %v327
        %v329 = vperm.slane %v321, %v328
        %v330 = vrot.slane %v317, 4
        %v331 = vsel %vm294, %v330, %v305
        %v332 = vrot.slane %v305, 4
        %v333 = vsel %vm294, %v317, %v332
        %v335 = vunpack.c.l.s4 1934713408
        %v336 = vunpack.c.0.s8 %v335
        %v337 = vperm.slane %v331, %v336
        %v339 = vunpack.c.l.s4 1934713408
        %v340 = vunpack.c.0.s8 %v339
        %v341 = vperm.slane %v333, %v340
        %v342 = vrot.slane %v325, 4
        %v343 = vsel %vm294, 0.0, %v342
        %v344 = vrot.slane %v329, 4
        %v345 = vsel %vm294, 0.0, %v344
        %v346 = vrot.slane %v337, 4
        %v347 = vsel %vm294, 0.0, %v346
        %v348 = vrot.slane %v341, 4
        %v349 = vsel %vm294, 0.0, %v348
        %v350 = vrot.slane %v272, 4
        %v351 = vsel %vm294, %v350, %v245
        %v352 = vrot.slane %v245, 4
        %v353 = vsel %vm294, %v272, %v352
        %v355 = vunpack.c.l.s4 1983009808
        %v356 = vunpack.c.0.s8 %v355
        %v357 = vperm.slane %v351, %v356
        %v359 = vunpack.c.l.s4 1983009808
        %v360 = vunpack.c.0.s8 %v359
        %v361 = vperm.slane %v353, %v360
        %v362 = vrot.slane %v284, 4
        %v363 = vsel %vm294, %v362, %v260
        %v364 = vrot.slane %v260, 4
        %v365 = vsel %vm294, %v284, %v364
        %v367 = vunpack.c.l.s4 1983009808
        %v368 = vunpack.c.0.s8 %v367
        %v369 = vperm.slane %v363, %v368
        %v371 = vunpack.c.l.s4 1983009808
        %v372 = vunpack.c.0.s8 %v371
        %v373 = vperm.slane %v365, %v372
        %v374 = vrot.slane %v369, 4
        %v375 = vsel %vm294, %v374, %v357
        %v376 = vrot.slane %v357, 4
        %v377 = vsel %vm294, %v369, %v376
        %v379 = vunpack.c.l.s4 1934713408
        %v380 = vunpack.c.0.s8 %v379
        %v381 = vperm.slane %v375, %v380
        %v383 = vunpack.c.l.s4 1934713408
        %v384 = vunpack.c.0.s8 %v383
        %v385 = vperm.slane %v377, %v384
        %v386 = vrot.slane %v373, 4
        %v387 = vsel %vm294, %v386, %v361
        %v388 = vrot.slane %v361, 4
        %v389 = vsel %vm294, %v373, %v388
        %v391 = vunpack.c.l.s4 1934713408
        %v392 = vunpack.c.0.s8 %v391
        %v393 = vperm.slane %v387, %v392
        %v395 = vunpack.c.l.s4 1934713408
        %v396 = vunpack.c.0.s8 %v395
        %v397 = vperm.slane %v389, %v396
        %v398 = vrot.slane %v381, 4
        %v399 = vsel %vm294, 0.0, %v398
        %v400 = vrot.slane %v385, 4
        %v401 = vsel %vm294, 0.0, %v400
        %v402 = vrot.slane %v393, 4
        %v403 = vsel %vm294, 0.0, %v402
        %v404 = vrot.slane %v397, 4
        %v405 = vsel %vm294, 0.0, %v404
        %v406 = vrot.slane %v274, 4
        %v407 = vsel %vm294, %v406, %v248
        %v408 = vrot.slane %v248, 4
        %v409 = vsel %vm294, %v274, %v408
        %v411 = vunpack.c.l.s4 1983009808
        %v412 = vunpack.c.0.s8 %v411
        %v413 = vperm.slane %v407, %v412
        %v415 = vunpack.c.l.s4 1983009808
        %v416 = vunpack.c.0.s8 %v415
        %v417 = vperm.slane %v409, %v416
        %v418 = vrot.slane %v286, 4
        %v419 = vsel %vm294, %v418, %v262
        %v420 = vrot.slane %v262, 4
        %v421 = vsel %vm294, %v286, %v420
        %v423 = vunpack.c.l.s4 1983009808
        %v424 = vunpack.c.0.s8 %v423
        %v425 = vperm.slane %v419, %v424
        %v427 = vunpack.c.l.s4 1983009808
        %v428 = vunpack.c.0.s8 %v427
        %v429 = vperm.slane %v421, %v428
        %v430 = vrot.slane %v425, 4
        %v431 = vsel %vm294, %v430, %v413
        %v432 = vrot.slane %v413, 4
        %v433 = vsel %vm294, %v425, %v432
        %v435 = vunpack.c.l.s4 1934713408
        %v436 = vunpack.c.0.s8 %v435
        %v437 = vperm.slane %v431, %v436
        %v439 = vunpack.c.l.s4 1934713408
        %v440 = vunpack.c.0.s8 %v439
        %v441 = vperm.slane %v433, %v440
        %v442 = vrot.slane %v429, 4
        %v443 = vsel %vm294, %v442, %v417
        %v444 = vrot.slane %v417, 4
        %v445 = vsel %vm294, %v429, %v444
        %v447 = vunpack.c.l.s4 1934713408
        %v448 = vunpack.c.0.s8 %v447
        %v449 = vperm.slane %v443, %v448
        %v451 = vunpack.c.l.s4 1934713408
        %v452 = vunpack.c.0.s8 %v451
        %v453 = vperm.slane %v445, %v452
        %v454 = vrot.slane %v437, 4
        %v455 = vsel %vm294, 0.0, %v454
        %v456 = vrot.slane %v441, 4
        %v457 = vsel %vm294, 0.0, %v456
        %v458 = vrot.slane %v449, 4
        %v459 = vsel %vm294, 0.0, %v458
        %v460 = vrot.slane %v453, 4
        %v461 = vsel %vm294, 0.0, %v460
        %v462 = vrot.slane %v276, 4
        %v463 = vsel %vm294, %v462, %v251
        %v464 = vrot.slane %v251, 4
        %v465 = vsel %vm294, %v276, %v464
        %v467 = vunpack.c.l.s4 1983009808
        %v468 = vunpack.c.0.s8 %v467
        %v469 = vperm.slane %v463, %v468
        %v471 = vunpack.c.l.s4 1983009808
        %v472 = vunpack.c.0.s8 %v471
        %v473 = vperm.slane %v465, %v472
        %v474 = vrot.slane %v288, 4
        %v475 = vsel %vm294, %v474, %v264
        %v476 = vrot.slane %v264, 4
        %v477 = vsel %vm294, %v288, %v476
        %v479 = vunpack.c.l.s4 1983009808
        %v480 = vunpack.c.0.s8 %v479
        %v481 = vperm.slane %v475, %v480
        %v483 = vunpack.c.l.s4 1983009808
        %v484 = vunpack.c.0.s8 %v483
        %v485 = vperm.slane %v477, %v484
        %v486 = vrot.slane %v481, 4
        %v487 = vsel %vm294, %v486, %v469
        %v488 = vrot.slane %v469, 4
        %v489 = vsel %vm294, %v481, %v488
        %v491 = vunpack.c.l.s4 1934713408
        %v492 = vunpack.c.0.s8 %v491
        %v493 = vperm.slane %v487, %v492
        %v495 = vunpack.c.l.s4 1934713408
        %v496 = vunpack.c.0.s8 %v495
        %v497 = vperm.slane %v489, %v496
        %v498 = vrot.slane %v485, 4
        %v499 = vsel %vm294, %v498, %v473
        %v500 = vrot.slane %v473, 4
        %v501 = vsel %vm294, %v485, %v500
        %v503 = vunpack.c.l.s4 1934713408
        %v504 = vunpack.c.0.s8 %v503
        %v505 = vperm.slane %v499, %v504
        %v507 = vunpack.c.l.s4 1934713408
        %v508 = vunpack.c.0.s8 %v507
        %v509 = vperm.slane %v501, %v508
        %v510 = vrot.slane %v493, 4
        %v511 = vsel %vm294, 0.0, %v510
        %v512 = vrot.slane %v497, 4
        %v513 = vsel %vm294, 0.0, %v512
        %v514 = vrot.slane %v505, 4
        %v515 = vsel %vm294, 0.0, %v514
        %v516 = vrot.slane %v509, 4
        %v517 = vsel %vm294, 0.0, %v516
        %vm518 = vcmask 257024
        %v519 = vsel %vm518, %v325, 0.0
        %520 = vadd.xlane.f32.xlu0 %v519
        %v521 = vpop.xlane.xlu0 %520
        %v522 = vsel %vm518, %v343, 0.0
        %523 = vadd.xlane.f32.xlu0 %v522
        %v524 = vpop.xlane.xlu0 %523
        %v525 = vsel %vm518, %v329, 0.0
        %526 = vadd.xlane.f32.xlu0 %v525
        %v527 = vpop.xlane.xlu0 %526
        %v528 = vsel %vm518, %v345, 0.0
        %529 = vadd.xlane.f32.xlu0 %v528
        %v530 = vpop.xlane.xlu0 %529
        %v531 = vsel %vm518, %v337, 0.0
        %532 = vadd.xlane.f32.xlu0 %v531
        %v533 = vpop.xlane.xlu0 %532
        %v534 = vsel %vm518, %v347, 0.0
        %535 = vadd.xlane.f32.xlu0 %v534
        %v536 = vpop.xlane.xlu0 %535
        %v537 = vsel %vm518, %v341, 0.0
        %538 = vadd.xlane.f32.xlu0 %v537
        %v539 = vpop.xlane.xlu0 %538
        %v540 = vsel %vm518, %v349, 0.0
        %541 = vadd.xlane.f32.xlu0 %v540
        %v542 = vpop.xlane.xlu0 %541
        %v543 = vsel %vm518, %v381, 0.0
        %544 = vadd.xlane.f32.xlu0 %v543
        %v545 = vpop.xlane.xlu0 %544
        %v546 = vsel %vm518, %v399, 0.0
        %547 = vadd.xlane.f32.xlu0 %v546
        %v548 = vpop.xlane.xlu0 %547
        %v549 = vsel %vm518, %v385, 0.0
        %550 = vadd.xlane.f32.xlu0 %v549
        %v551 = vpop.xlane.xlu0 %550
        %v552 = vsel %vm518, %v401, 0.0
        %553 = vadd.xlane.f32.xlu0 %v552
        %v554 = vpop.xlane.xlu0 %553
        %v555 = vsel %vm518, %v393, 0.0
        %556 = vadd.xlane.f32.xlu0 %v555
        %v557 = vpop.xlane.xlu0 %556
        %v558 = vsel %vm518, %v403, 0.0
        %559 = vadd.xlane.f32.xlu0 %v558
        %v560 = vpop.xlane.xlu0 %559
        %v561 = vsel %vm518, %v397, 0.0
        %562 = vadd.xlane.f32.xlu0 %v561
        %v563 = vpop.xlane.xlu0 %562
        %v564 = vsel %vm518, %v405, 0.0
        %565 = vadd.xlane.f32.xlu0 %v564
        %v566 = vpop.xlane.xlu0 %565
        %v567 = vsel %vm518, %v437, 0.0
        %568 = vadd.xlane.f32.xlu0 %v567
        %v569 = vpop.xlane.xlu0 %568
        %v570 = vsel %vm518, %v455, 0.0
        %571 = vadd.xlane.f32.xlu0 %v570
        %v572 = vpop.xlane.xlu0 %571
        %v573 = vsel %vm518, %v441, 0.0
        %574 = vadd.xlane.f32.xlu0 %v573
        %v575 = vpop.xlane.xlu0 %574
        %v576 = vsel %vm518, %v457, 0.0
        %577 = vadd.xlane.f32.xlu0 %v576
        %v578 = vpop.xlane.xlu0 %577
        %v579 = vsel %vm518, %v449, 0.0
        %580 = vadd.xlane.f32.xlu0 %v579
        %v581 = vpop.xlane.xlu0 %580
        %v582 = vsel %vm518, %v459, 0.0
        %583 = vadd.xlane.f32.xlu0 %v582
        %v584 = vpop.xlane.xlu0 %583
        %v585 = vsel %vm518, %v453, 0.0
        %586 = vadd.xlane.f32.xlu0 %v585
        %v587 = vpop.xlane.xlu0 %586
        %v588 = vsel %vm518, %v461, 0.0
        %589 = vadd.xlane.f32.xlu0 %v588
        %v590 = vpop.xlane.xlu0 %589
        %v591 = vsel %vm518, %v493, 0.0
        %592 = vadd.xlane.f32.xlu0 %v591
        %v593 = vpop.xlane.xlu0 %592
        %v594 = vsel %vm518, %v511, 0.0
        %595 = vadd.xlane.f32.xlu0 %v594
        %v596 = vpop.xlane.xlu0 %595
        %v597 = vsel %vm518, %v497, 0.0
        %598 = vadd.xlane.f32.xlu0 %v597
        %v599 = vpop.xlane.xlu0 %598
        %v600 = vsel %vm518, %v513, 0.0
        %601 = vadd.xlane.f32.xlu0 %v600
        %v602 = vpop.xlane.xlu0 %601
        %v603 = vsel %vm518, %v505, 0.0
        %604 = vadd.xlane.f32.xlu0 %v603
        %v605 = vpop.xlane.xlu0 %604
        %v606 = vsel %vm518, %v515, 0.0
        %607 = vadd.xlane.f32.xlu0 %v606
        %v608 = vpop.xlane.xlu0 %607
        %v609 = vsel %vm518, %v509, 0.0
        %610 = vadd.xlane.f32.xlu0 %v609
        %v611 = vpop.xlane.xlu0 %610
        %v612 = vsel %vm518, %v517, 0.0
        %613 = vadd.xlane.f32.xlu0 %v612
        %v614 = vpop.xlane.xlu0 %613
        %v615 = vrcp.pop 32.0
        %v616 = vmul.f32 32.0, %v615
        %v617 = vsub.f32 1.0, %v616
        %v618 = vmul.f32 %v615, %v617
        %v619 = vadd.f32 %v615, %v618
        %vm620 = vweird.f32 %v615
        %v621 = vsel %vm620, %v615, %v619
        %v622 = vmul.f32 %v521, %v621
        %v623 = vmul.f32 %v524, %v621
        %v624 = vmul.f32 %v527, %v621
        %v625 = vmul.f32 %v530, %v621
        %v626 = vmul.f32 %v533, %v621
        %v627 = vmul.f32 %v536, %v621
        %v628 = vmul.f32 %v539, %v621
        %v629 = vmul.f32 %v542, %v621
        %v630 = vmul.f32 %v545, %v621
        %v631 = vmul.f32 %v548, %v621
        %v632 = vmul.f32 %v551, %v621
        %v633 = vmul.f32 %v554, %v621
        %v634 = vmul.f32 %v557, %v621
        %v635 = vmul.f32 %v560, %v621
        %v636 = vmul.f32 %v563, %v621
        %v637 = vmul.f32 %v566, %v621
        %v638 = vmul.f32 %v569, %v621
        %v639 = vmul.f32 %v572, %v621
        %v640 = vmul.f32 %v575, %v621
        %v641 = vmul.f32 %v578, %v621
        %v642 = vmul.f32 %v581, %v621
        %v643 = vmul.f32 %v584, %v621
        %v644 = vmul.f32 %v587, %v621
        %v645 = vmul.f32 %v590, %v621
        %v646 = vmul.f32 %v593, %v621
        %v647 = vmul.f32 %v596, %v621
        %v648 = vmul.f32 %v599, %v621
        %v649 = vmul.f32 %v602, %v621
        %v650 = vmul.f32 %v605, %v621
        %v651 = vmul.f32 %v608, %v621
        %v652 = vmul.f32 %v611, %v621
        %v653 = vmul.f32 %v614, %v621
        %v654 = vsub.f32 %v325, %v622
        %v655 = vsub.f32 %v343, %v623
        %v656 = vsub.f32 %v329, %v624
        %v657 = vsub.f32 %v345, %v625
        %v658 = vsub.f32 %v337, %v626
        %v659 = vsub.f32 %v347, %v627
        %v660 = vsub.f32 %v341, %v628
        %v661 = vsub.f32 %v349, %v629
        %v662 = vsub.f32 %v381, %v630
        %v663 = vsub.f32 %v399, %v631
        %v664 = vsub.f32 %v385, %v632
        %v665 = vsub.f32 %v401, %v633
        %v666 = vsub.f32 %v393, %v634
        %v667 = vsub.f32 %v403, %v635
        %v668 = vsub.f32 %v397, %v636
        %v669 = vsub.f32 %v405, %v637
        %v670 = vsub.f32 %v437, %v638
        %v671 = vsub.f32 %v455, %v639
        %v672 = vsub.f32 %v441, %v640
        %v673 = vsub.f32 %v457, %v641
        %v674 = vsub.f32 %v449, %v642
        %v675 = vsub.f32 %v459, %v643
        %v676 = vsub.f32 %v453, %v644
        %v677 = vsub.f32 %v461, %v645
        %v678 = vsub.f32 %v493, %v646
        %v679 = vsub.f32 %v511, %v647
        %v680 = vsub.f32 %v497, %v648
        %v681 = vsub.f32 %v513, %v649
        %v682 = vsub.f32 %v505, %v650
        %v683 = vsub.f32 %v515, %v651
        %v684 = vsub.f32 %v509, %v652
        %v685 = vsub.f32 %v517, %v653
        %v686 = vmul.f32 %v654, %v654
        %v687 = vmul.f32 %v655, %v655
        %v688 = vmul.f32 %v656, %v656
        %v689 = vmul.f32 %v657, %v657
        %v690 = vmul.f32 %v658, %v658
        %v691 = vmul.f32 %v659, %v659
        %v692 = vmul.f32 %v660, %v660
        %v693 = vmul.f32 %v661, %v661
        %v694 = vmul.f32 %v662, %v662
        %v695 = vmul.f32 %v663, %v663
        %v696 = vmul.f32 %v664, %v664
        %v697 = vmul.f32 %v665, %v665
        %v698 = vmul.f32 %v666, %v666
        %v699 = vmul.f32 %v667, %v667
        %v700 = vmul.f32 %v668, %v668
        %v701 = vmul.f32 %v669, %v669
        %v702 = vmul.f32 %v670, %v670
        %v703 = vmul.f32 %v671, %v671
        %v704 = vmul.f32 %v672, %v672
        %v705 = vmul.f32 %v673, %v673
        %v706 = vmul.f32 %v674, %v674
        %v707 = vmul.f32 %v675, %v675
        %v708 = vmul.f32 %v676, %v676
        %v709 = vmul.f32 %v677, %v677
        %v710 = vmul.f32 %v678, %v678
        %v711 = vmul.f32 %v679, %v679
        %v712 = vmul.f32 %v680, %v680
        %v713 = vmul.f32 %v681, %v681
        %v714 = vmul.f32 %v682, %v682
        %v715 = vmul.f32 %v683, %v683
        %v716 = vmul.f32 %v684, %v684
        %v717 = vmul.f32 %v685, %v685
        %v718 = vsel %vm518, %v686, 0.0
        %719 = vadd.xlane.f32.xlu0 %v718
        %v720 = vpop.xlane.xlu0 %719
        %v721 = vsel %vm518, %v687, 0.0
        %722 = vadd.xlane.f32.xlu0 %v721
        %v723 = vpop.xlane.xlu0 %722
        %v724 = vsel %vm518, %v688, 0.0
        %725 = vadd.xlane.f32.xlu0 %v724
        %v726 = vpop.xlane.xlu0 %725
        %v727 = vsel %vm518, %v689, 0.0
        %728 = vadd.xlane.f32.xlu0 %v727
        %v729 = vpop.xlane.xlu0 %728
        %v730 = vsel %vm518, %v690, 0.0
        %731 = vadd.xlane.f32.xlu0 %v730
        %v732 = vpop.xlane.xlu0 %731
        %v733 = vsel %vm518, %v691, 0.0
        %734 = vadd.xlane.f32.xlu0 %v733
        %v735 = vpop.xlane.xlu0 %734
        %v736 = vsel %vm518, %v692, 0.0
        %737 = vadd.xlane.f32.xlu0 %v736
        %v738 = vpop.xlane.xlu0 %737
        %v739 = vsel %vm518, %v693, 0.0
        %740 = vadd.xlane.f32.xlu0 %v739
        %v741 = vpop.xlane.xlu0 %740
        %v742 = vsel %vm518, %v694, 0.0
        %743 = vadd.xlane.f32.xlu0 %v742
        %v744 = vpop.xlane.xlu0 %743
        %v745 = vsel %vm518, %v695, 0.0
        %746 = vadd.xlane.f32.xlu0 %v745
        %v747 = vpop.xlane.xlu0 %746
        %v748 = vsel %vm518, %v696, 0.0
        %749 = vadd.xlane.f32.xlu0 %v748
        %v750 = vpop.xlane.xlu0 %749
        %v751 = vsel %vm518, %v697, 0.0
        %752 = vadd.xlane.f32.xlu0 %v751
        %v753 = vpop.xlane.xlu0 %752
        %v754 = vsel %vm518, %v698, 0.0
        %755 = vadd.xlane.f32.xlu0 %v754
        %v756 = vpop.xlane.xlu0 %755
        %v757 = vsel %vm518, %v699, 0.0
        %758 = vadd.xlane.f32.xlu0 %v757
        %v759 = vpop.xlane.xlu0 %758
        %v760 = vsel %vm518, %v700, 0.0
        %761 = vadd.xlane.f32.xlu0 %v760
        %v762 = vpop.xlane.xlu0 %761
        %v763 = vsel %vm518, %v701, 0.0
        %764 = vadd.xlane.f32.xlu0 %v763
        %v765 = vpop.xlane.xlu0 %764
        %v766 = vsel %vm518, %v702, 0.0
        %767 = vadd.xlane.f32.xlu0 %v766
        %v768 = vpop.xlane.xlu0 %767
        %v769 = vsel %vm518, %v703, 0.0
        %770 = vadd.xlane.f32.xlu0 %v769
        %v771 = vpop.xlane.xlu0 %770
        %v772 = vsel %vm518, %v704, 0.0
        %773 = vadd.xlane.f32.xlu0 %v772
        %v774 = vpop.xlane.xlu0 %773
        %v775 = vsel %vm518, %v705, 0.0
        %776 = vadd.xlane.f32.xlu0 %v775
        %v777 = vpop.xlane.xlu0 %776
        %v778 = vsel %vm518, %v706, 0.0
        %779 = vadd.xlane.f32.xlu0 %v778
        %v780 = vpop.xlane.xlu0 %779
        %v781 = vsel %vm518, %v707, 0.0
        %782 = vadd.xlane.f32.xlu0 %v781
        %v783 = vpop.xlane.xlu0 %782
        %v784 = vsel %vm518, %v708, 0.0
        %785 = vadd.xlane.f32.xlu0 %v784
        %v786 = vpop.xlane.xlu0 %785
        %v787 = vsel %vm518, %v709, 0.0
        %788 = vadd.xlane.f32.xlu0 %v787
        %v789 = vpop.xlane.xlu0 %788
        %v790 = vsel %vm518, %v710, 0.0
        %791 = vadd.xlane.f32.xlu0 %v790
        %v792 = vpop.xlane.xlu0 %791
        %v793 = vsel %vm518, %v711, 0.0
        %794 = vadd.xlane.f32.xlu0 %v793
        %v795 = vpop.xlane.xlu0 %794
        %v796 = vsel %vm518, %v712, 0.0
        %797 = vadd.xlane.f32.xlu0 %v796
        %v798 = vpop.xlane.xlu0 %797
        %v799 = vsel %vm518, %v713, 0.0
        %800 = vadd.xlane.f32.xlu0 %v799
        %v801 = vpop.xlane.xlu0 %800
        %v802 = vsel %vm518, %v714, 0.0
        %803 = vadd.xlane.f32.xlu0 %v802
        %v804 = vpop.xlane.xlu0 %803
        %v805 = vsel %vm518, %v715, 0.0
        %806 = vadd.xlane.f32.xlu0 %v805
        %v807 = vpop.xlane.xlu0 %806
        %v808 = vsel %vm518, %v716, 0.0
        %809 = vadd.xlane.f32.xlu0 %v808
        %v810 = vpop.xlane.xlu0 %809
        %v811 = vsel %vm518, %v717, 0.0
        %812 = vadd.xlane.f32.xlu0 %v811
        %v813 = vpop.xlane.xlu0 %812
        %v814 = vmul.f32 %v720, %v621
        %v815 = vmul.f32 %v723, %v621
        %v816 = vmul.f32 %v726, %v621
        %v817 = vmul.f32 %v729, %v621
        %v818 = vmul.f32 %v732, %v621
        %v819 = vmul.f32 %v735, %v621
        %v820 = vmul.f32 %v738, %v621
        %v821 = vmul.f32 %v741, %v621
        %v822 = vmul.f32 %v744, %v621
        %v823 = vmul.f32 %v747, %v621
        %v824 = vmul.f32 %v750, %v621
        %v825 = vmul.f32 %v753, %v621
        %v826 = vmul.f32 %v756, %v621
        %v827 = vmul.f32 %v759, %v621
        %v828 = vmul.f32 %v762, %v621
        %v829 = vmul.f32 %v765, %v621
        %v830 = vmul.f32 %v768, %v621
        %v831 = vmul.f32 %v771, %v621
        %v832 = vmul.f32 %v774, %v621
        %v833 = vmul.f32 %v777, %v621
        %v834 = vmul.f32 %v780, %v621
        %v835 = vmul.f32 %v783, %v621
        %v836 = vmul.f32 %v786, %v621
        %v837 = vmul.f32 %v789, %v621
        %v838 = vmul.f32 %v792, %v621
        %v839 = vmul.f32 %v795, %v621
        %v840 = vmul.f32 %v798, %v621
        %v841 = vmul.f32 %v801, %v621
        %v842 = vmul.f32 %v804, %v621
        %v843 = vmul.f32 %v807, %v621
        %v844 = vmul.f32 %v810, %v621
        %v845 = vmul.f32 %v813, %v621
        %v846 = vadd.f32 %v814, 1e-05
        %v847 = vadd.f32 %v815, 1e-05
        %v848 = vadd.f32 %v816, 1e-05
        %v849 = vadd.f32 %v817, 1e-05
        %v850 = vadd.f32 %v818, 1e-05
        %v851 = vadd.f32 %v819, 1e-05
        %v852 = vadd.f32 %v820, 1e-05
        %v853 = vadd.f32 %v821, 1e-05
        %v854 = vadd.f32 %v822, 1e-05
        %v855 = vadd.f32 %v823, 1e-05
        %v856 = vadd.f32 %v824, 1e-05
        %v857 = vadd.f32 %v825, 1e-05
        %v858 = vadd.f32 %v826, 1e-05
        %v859 = vadd.f32 %v827, 1e-05
        %v860 = vadd.f32 %v828, 1e-05
        %v861 = vadd.f32 %v829, 1e-05
        %v862 = vadd.f32 %v830, 1e-05
        %v863 = vadd.f32 %v831, 1e-05
        %v864 = vadd.f32 %v832, 1e-05
        %v865 = vadd.f32 %v833, 1e-05
        %v866 = vadd.f32 %v834, 1e-05
        %v867 = vadd.f32 %v835, 1e-05
        %v868 = vadd.f32 %v836, 1e-05
        %v869 = vadd.f32 %v837, 1e-05
        %v870 = vadd.f32 %v838, 1e-05
        %v871 = vadd.f32 %v839, 1e-05
        %v872 = vadd.f32 %v840, 1e-05
        %v873 = vadd.f32 %v841, 1e-05
        %v874 = vadd.f32 %v842, 1e-05
        %v875 = vadd.f32 %v843, 1e-05
        %v876 = vadd.f32 %v844, 1e-05
        %v877 = vadd.f32 %v845, 1e-05
        %v878 = vrsqrt.pop %v846
        %v879 = vmul.f32 %v878, %v846
        %v880 = vmul.f32 %v879, %v878
        %v881 = vmul.f32 0.5, %v880
        %v882 = vsub.f32 1.5, %v881
        %v883 = vmul.f32 %v878, %v882
        %vm884 = vweird.f32 %v846
        %vm885 = vweird.f32 %v878
        %vm886 = vmor %vm884, %vm885
        %v887 = vsel %vm886, %v878, %v883
        %v888 = vrsqrt.pop %v847
        %v889 = vmul.f32 %v888, %v847
        %v890 = vmul.f32 %v889, %v888
        %v891 = vmul.f32 0.5, %v890
        %v892 = vsub.f32 1.5, %v891
        %v893 = vmul.f32 %v888, %v892
        %vm894 = vweird.f32 %v847
        %vm895 = vweird.f32 %v888
        %vm896 = vmor %vm894, %vm895
        %v897 = vsel %vm896, %v888, %v893
        %v898 = vrsqrt.pop %v848
        %v899 = vmul.f32 %v898, %v848
        %v900 = vmul.f32 %v899, %v898
        %v901 = vmul.f32 0.5, %v900
        %v902 = vsub.f32 1.5, %v901
        %v903 = vmul.f32 %v898, %v902
        %vm904 = vweird.f32 %v848
        %vm905 = vweird.f32 %v898
        %vm906 = vmor %vm904, %vm905
        %v907 = vsel %vm906, %v898, %v903
        %v908 = vrsqrt.pop %v849
        %v909 = vmul.f32 %v908, %v849
        %v910 = vmul.f32 %v909, %v908
        %v911 = vmul.f32 0.5, %v910
        %v912 = vsub.f32 1.5, %v911
        %v913 = vmul.f32 %v908, %v912
        %vm914 = vweird.f32 %v849
        %vm915 = vweird.f32 %v908
        %vm916 = vmor %vm914, %vm915
        %v917 = vsel %vm916, %v908, %v913
        %v918 = vrsqrt.pop %v850
        %v919 = vmul.f32 %v918, %v850
        %v920 = vmul.f32 %v919, %v918
        %v921 = vmul.f32 0.5, %v920
        %v922 = vsub.f32 1.5, %v921
        %v923 = vmul.f32 %v918, %v922
        %vm924 = vweird.f32 %v850
        %vm925 = vweird.f32 %v918
        %vm926 = vmor %vm924, %vm925
        %v927 = vsel %vm926, %v918, %v923
        %v928 = vrsqrt.pop %v851
        %v929 = vmul.f32 %v928, %v851
        %v930 = vmul.f32 %v929, %v928
        %v931 = vmul.f32 0.5, %v930
        %v932 = vsub.f32 1.5, %v931
        %v933 = vmul.f32 %v928, %v932
        %vm934 = vweird.f32 %v851
        %vm935 = vweird.f32 %v928
        %vm936 = vmor %vm934, %vm935
        %v937 = vsel %vm936, %v928, %v933
        %v938 = vrsqrt.pop %v852
        %v939 = vmul.f32 %v938, %v852
        %v940 = vmul.f32 %v939, %v938
        %v941 = vmul.f32 0.5, %v940
        %v942 = vsub.f32 1.5, %v941
        %v943 = vmul.f32 %v938, %v942
        %vm944 = vweird.f32 %v852
        %vm945 = vweird.f32 %v938
        %vm946 = vmor %vm944, %vm945
        %v947 = vsel %vm946, %v938, %v943
        %v948 = vrsqrt.pop %v853
        %v949 = vmul.f32 %v948, %v853
        %v950 = vmul.f32 %v949, %v948
        %v951 = vmul.f32 0.5, %v950
        %v952 = vsub.f32 1.5, %v951
        %v953 = vmul.f32 %v948, %v952
        %vm954 = vweird.f32 %v853
        %vm955 = vweird.f32 %v948
        %vm956 = vmor %vm954, %vm955
        %v957 = vsel %vm956, %v948, %v953
        %v958 = vrsqrt.pop %v854
        %v959 = vmul.f32 %v958, %v854
        %v960 = vmul.f32 %v959, %v958
        %v961 = vmul.f32 0.5, %v960
        %v962 = vsub.f32 1.5, %v961
        %v963 = vmul.f32 %v958, %v962
        %vm964 = vweird.f32 %v854
        %vm965 = vweird.f32 %v958
        %vm966 = vmor %vm964, %vm965
        %v967 = vsel %vm966, %v958, %v963
        %v968 = vrsqrt.pop %v855
        %v969 = vmul.f32 %v968, %v855
        %v970 = vmul.f32 %v969, %v968
        %v971 = vmul.f32 0.5, %v970
        %v972 = vsub.f32 1.5, %v971
        %v973 = vmul.f32 %v968, %v972
        %vm974 = vweird.f32 %v855
        %vm975 = vweird.f32 %v968
        %vm976 = vmor %vm974, %vm975
        %v977 = vsel %vm976, %v968, %v973
        %v978 = vrsqrt.pop %v856
        %v979 = vmul.f32 %v978, %v856
        %v980 = vmul.f32 %v979, %v978
        %v981 = vmul.f32 0.5, %v980
        %v982 = vsub.f32 1.5, %v981
        %v983 = vmul.f32 %v978, %v982
        %vm984 = vweird.f32 %v856
        %vm985 = vweird.f32 %v978
        %vm986 = vmor %vm984, %vm985
        %v987 = vsel %vm986, %v978, %v983
        %v988 = vrsqrt.pop %v857
        %v989 = vmul.f32 %v988, %v857
        %v990 = vmul.f32 %v989, %v988
        %v991 = vmul.f32 0.5, %v990
        %v992 = vsub.f32 1.5, %v991
        %v993 = vmul.f32 %v988, %v992
        %vm994 = vweird.f32 %v857
        %vm995 = vweird.f32 %v988
        %vm996 = vmor %vm994, %vm995
        %v997 = vsel %vm996, %v988, %v993
        %v998 = vrsqrt.pop %v858
        %v999 = vmul.f32 %v998, %v858
        %v1000 = vmul.f32 %v999, %v998
        %v1001 = vmul.f32 0.5, %v1000
        %v1002 = vsub.f32 1.5, %v1001
        %v1003 = vmul.f32 %v998, %v1002
        %vm1004 = vweird.f32 %v858
        %vm1005 = vweird.f32 %v998
        %vm1006 = vmor %vm1004, %vm1005
        %v1007 = vsel %vm1006, %v998, %v1003
        %v1008 = vrsqrt.pop %v859
        %v1009 = vmul.f32 %v1008, %v859
        %v1010 = vmul.f32 %v1009, %v1008
        %v1011 = vmul.f32 0.5, %v1010
        %v1012 = vsub.f32 1.5, %v1011
        %v1013 = vmul.f32 %v1008, %v1012
        %vm1014 = vweird.f32 %v859
        %vm1015 = vweird.f32 %v1008
        %vm1016 = vmor %vm1014, %vm1015
        %v1017 = vsel %vm1016, %v1008, %v1013
        %v1018 = vrsqrt.pop %v860
        %v1019 = vmul.f32 %v1018, %v860
        %v1020 = vmul.f32 %v1019, %v1018
        %v1021 = vmul.f32 0.5, %v1020
        %v1022 = vsub.f32 1.5, %v1021
        %v1023 = vmul.f32 %v1018, %v1022
        %vm1024 = vweird.f32 %v860
        %vm1025 = vweird.f32 %v1018
        %vm1026 = vmor %vm1024, %vm1025
        %v1027 = vsel %vm1026, %v1018, %v1023
        %v1028 = vrsqrt.pop %v861
        %v1029 = vmul.f32 %v1028, %v861
        %v1030 = vmul.f32 %v1029, %v1028
        %v1031 = vmul.f32 0.5, %v1030
        %v1032 = vsub.f32 1.5, %v1031
        %v1033 = vmul.f32 %v1028, %v1032
        %vm1034 = vweird.f32 %v861
        %vm1035 = vweird.f32 %v1028
        %vm1036 = vmor %vm1034, %vm1035
        %v1037 = vsel %vm1036, %v1028, %v1033
        %v1038 = vrsqrt.pop %v862
        %v1039 = vmul.f32 %v1038, %v862
        %v1040 = vmul.f32 %v1039, %v1038
        %v1041 = vmul.f32 0.5, %v1040
        %v1042 = vsub.f32 1.5, %v1041
        %v1043 = vmul.f32 %v1038, %v1042
        %vm1044 = vweird.f32 %v862
        %vm1045 = vweird.f32 %v1038
        %vm1046 = vmor %vm1044, %vm1045
        %v1047 = vsel %vm1046, %v1038, %v1043
        %v1048 = vrsqrt.pop %v863
        %v1049 = vmul.f32 %v1048, %v863
        %v1050 = vmul.f32 %v1049, %v1048
        %v1051 = vmul.f32 0.5, %v1050
        %v1052 = vsub.f32 1.5, %v1051
        %v1053 = vmul.f32 %v1048, %v1052
        %vm1054 = vweird.f32 %v863
        %vm1055 = vweird.f32 %v1048
        %vm1056 = vmor %vm1054, %vm1055
        %v1057 = vsel %vm1056, %v1048, %v1053
        %v1058 = vrsqrt.pop %v864
        %v1059 = vmul.f32 %v1058, %v864
        %v1060 = vmul.f32 %v1059, %v1058
        %v1061 = vmul.f32 0.5, %v1060
        %v1062 = vsub.f32 1.5, %v1061
        %v1063 = vmul.f32 %v1058, %v1062
        %vm1064 = vweird.f32 %v864
        %vm1065 = vweird.f32 %v1058
        %vm1066 = vmor %vm1064, %vm1065
        %v1067 = vsel %vm1066, %v1058, %v1063
        %v1068 = vrsqrt.pop %v865
        %v1069 = vmul.f32 %v1068, %v865
        %v1070 = vmul.f32 %v1069, %v1068
        %v1071 = vmul.f32 0.5, %v1070
        %v1072 = vsub.f32 1.5, %v1071
        %v1073 = vmul.f32 %v1068, %v1072
        %vm1074 = vweird.f32 %v865
        %vm1075 = vweird.f32 %v1068
        %vm1076 = vmor %vm1074, %vm1075
        %v1077 = vsel %vm1076, %v1068, %v1073
        %v1078 = vrsqrt.pop %v866
        %v1079 = vmul.f32 %v1078, %v866
        %v1080 = vmul.f32 %v1079, %v1078
        %v1081 = vmul.f32 0.5, %v1080
        %v1082 = vsub.f32 1.5, %v1081
        %v1083 = vmul.f32 %v1078, %v1082
        %vm1084 = vweird.f32 %v866
        %vm1085 = vweird.f32 %v1078
        %vm1086 = vmor %vm1084, %vm1085
        %v1087 = vsel %vm1086, %v1078, %v1083
        %v1088 = vrsqrt.pop %v867
        %v1089 = vmul.f32 %v1088, %v867
        %v1090 = vmul.f32 %v1089, %v1088
        %v1091 = vmul.f32 0.5, %v1090
        %v1092 = vsub.f32 1.5, %v1091
        %v1093 = vmul.f32 %v1088, %v1092
        %vm1094 = vweird.f32 %v867
        %vm1095 = vweird.f32 %v1088
        %vm1096 = vmor %vm1094, %vm1095
        %v1097 = vsel %vm1096, %v1088, %v1093
        %v1098 = vrsqrt.pop %v868
        %v1099 = vmul.f32 %v1098, %v868
        %v1100 = vmul.f32 %v1099, %v1098
        %v1101 = vmul.f32 0.5, %v1100
        %v1102 = vsub.f32 1.5, %v1101
        %v1103 = vmul.f32 %v1098, %v1102
        %vm1104 = vweird.f32 %v868
        %vm1105 = vweird.f32 %v1098
        %vm1106 = vmor %vm1104, %vm1105
        %v1107 = vsel %vm1106, %v1098, %v1103
        %v1108 = vrsqrt.pop %v869
        %v1109 = vmul.f32 %v1108, %v869
        %v1110 = vmul.f32 %v1109, %v1108
        %v1111 = vmul.f32 0.5, %v1110
        %v1112 = vsub.f32 1.5, %v1111
        %v1113 = vmul.f32 %v1108, %v1112
        %vm1114 = vweird.f32 %v869
        %vm1115 = vweird.f32 %v1108
        %vm1116 = vmor %vm1114, %vm1115
        %v1117 = vsel %vm1116, %v1108, %v1113
        %v1118 = vrsqrt.pop %v870
        %v1119 = vmul.f32 %v1118, %v870
        %v1120 = vmul.f32 %v1119, %v1118
        %v1121 = vmul.f32 0.5, %v1120
        %v1122 = vsub.f32 1.5, %v1121
        %v1123 = vmul.f32 %v1118, %v1122
        %vm1124 = vweird.f32 %v870
        %vm1125 = vweird.f32 %v1118
        %vm1126 = vmor %vm1124, %vm1125
        %v1127 = vsel %vm1126, %v1118, %v1123
        %v1128 = vrsqrt.pop %v871
        %v1129 = vmul.f32 %v1128, %v871
        %v1130 = vmul.f32 %v1129, %v1128
        %v1131 = vmul.f32 0.5, %v1130
        %v1132 = vsub.f32 1.5, %v1131
        %v1133 = vmul.f32 %v1128, %v1132
        %vm1134 = vweird.f32 %v871
        %vm1135 = vweird.f32 %v1128
        %vm1136 = vmor %vm1134, %vm1135
        %v1137 = vsel %vm1136, %v1128, %v1133
        %v1138 = vrsqrt.pop %v872
        %v1139 = vmul.f32 %v1138, %v872
        %v1140 = vmul.f32 %v1139, %v1138
        %v1141 = vmul.f32 0.5, %v1140
        %v1142 = vsub.f32 1.5, %v1141
        %v1143 = vmul.f32 %v1138, %v1142
        %vm1144 = vweird.f32 %v872
        %vm1145 = vweird.f32 %v1138
        %vm1146 = vmor %vm1144, %vm1145
        %v1147 = vsel %vm1146, %v1138, %v1143
        %v1148 = vrsqrt.pop %v873
        %v1149 = vmul.f32 %v1148, %v873
        %v1150 = vmul.f32 %v1149, %v1148
        %v1151 = vmul.f32 0.5, %v1150
        %v1152 = vsub.f32 1.5, %v1151
        %v1153 = vmul.f32 %v1148, %v1152
        %vm1154 = vweird.f32 %v873
        %vm1155 = vweird.f32 %v1148
        %vm1156 = vmor %vm1154, %vm1155
        %v1157 = vsel %vm1156, %v1148, %v1153
        %v1158 = vrsqrt.pop %v874
        %v1159 = vmul.f32 %v1158, %v874
        %v1160 = vmul.f32 %v1159, %v1158
        %v1161 = vmul.f32 0.5, %v1160
        %v1162 = vsub.f32 1.5, %v1161
        %v1163 = vmul.f32 %v1158, %v1162
        %vm1164 = vweird.f32 %v874
        %vm1165 = vweird.f32 %v1158
        %vm1166 = vmor %vm1164, %vm1165
        %v1167 = vsel %vm1166, %v1158, %v1163
        %v1168 = vrsqrt.pop %v875
        %v1169 = vmul.f32 %v1168, %v875
        %v1170 = vmul.f32 %v1169, %v1168
        %v1171 = vmul.f32 0.5, %v1170
        %v1172 = vsub.f32 1.5, %v1171
        %v1173 = vmul.f32 %v1168, %v1172
        %vm1174 = vweird.f32 %v875
        %vm1175 = vweird.f32 %v1168
        %vm1176 = vmor %vm1174, %vm1175
        %v1177 = vsel %vm1176, %v1168, %v1173
        %v1178 = vrsqrt.pop %v876
        %v1179 = vmul.f32 %v1178, %v876
        %v1180 = vmul.f32 %v1179, %v1178
        %v1181 = vmul.f32 0.5, %v1180
        %v1182 = vsub.f32 1.5, %v1181
        %v1183 = vmul.f32 %v1178, %v1182
        %vm1184 = vweird.f32 %v876
        %vm1185 = vweird.f32 %v1178
        %vm1186 = vmor %vm1184, %vm1185
        %v1187 = vsel %vm1186, %v1178, %v1183
        %v1188 = vrsqrt.pop %v877
        %v1189 = vmul.f32 %v1188, %v877
        %v1190 = vmul.f32 %v1189, %v1188
        %v1191 = vmul.f32 0.5, %v1190
        %v1192 = vsub.f32 1.5, %v1191
        %v1193 = vmul.f32 %v1188, %v1192
        %vm1194 = vweird.f32 %v877
        %vm1195 = vweird.f32 %v1188
        %vm1196 = vmor %vm1194, %vm1195
        %v1197 = vsel %vm1196, %v1188, %v1193
        %v1198 = vmul.f32 %v654, %v887
        %v1199 = vmul.f32 %v655, %v897
        %v1200 = vmul.f32 %v656, %v907
        %v1201 = vmul.f32 %v657, %v917
        %v1202 = vmul.f32 %v658, %v927
        %v1203 = vmul.f32 %v659, %v937
        %v1204 = vmul.f32 %v660, %v947
        %v1205 = vmul.f32 %v661, %v957
        %v1206 = vmul.f32 %v662, %v967
        %v1207 = vmul.f32 %v663, %v977
        %v1208 = vmul.f32 %v664, %v987
        %v1209 = vmul.f32 %v665, %v997
        %v1210 = vmul.f32 %v666, %v1007
        %v1211 = vmul.f32 %v667, %v1017
        %v1212 = vmul.f32 %v668, %v1027
        %v1213 = vmul.f32 %v669, %v1037
        %v1214 = vmul.f32 %v670, %v1047
        %v1215 = vmul.f32 %v671, %v1057
        %v1216 = vmul.f32 %v672, %v1067
        %v1217 = vmul.f32 %v673, %v1077
        %v1218 = vmul.f32 %v674, %v1087
        %v1219 = vmul.f32 %v675, %v1097
        %v1220 = vmul.f32 %v676, %v1107
        %v1221 = vmul.f32 %v677, %v1117
        %v1222 = vmul.f32 %v678, %v1127
        %v1223 = vmul.f32 %v679, %v1137
        %v1224 = vmul.f32 %v680, %v1147
        %v1225 = vmul.f32 %v681, %v1157
        %v1226 = vmul.f32 %v682, %v1167
        %v1227 = vmul.f32 %v683, %v1177
        %v1228 = vmul.f32 %v684, %v1187
        %v1229 = vmul.f32 %v685, %v1197
        %v1230 = vrot.slane %v1200, 4
        %v1231 = vsel %vm294, %v1230, %v1198
        %v1233 = vunpack.c.l.s4 1983009808
        %v1234 = vunpack.c.0.s8 %v1233
        %v1235 = vperm.slane %v1231, %v1234
        %v1236 = vrot.slane %v1201, 4
        %v1237 = vsel %vm294, %v1236, %v1199
        %v1239 = vunpack.c.l.s4 1983009808
        %v1240 = vunpack.c.0.s8 %v1239
        %v1241 = vperm.slane %v1237, %v1240
        %v1242 = vrot.slane %v1204, 4
        %v1243 = vsel %vm294, %v1242, %v1202
        %v1245 = vunpack.c.l.s4 1983009808
        %v1246 = vunpack.c.0.s8 %v1245
        %v1247 = vperm.slane %v1243, %v1246
        %v1248 = vrot.slane %v1205, 4
        %v1249 = vsel %vm294, %v1248, %v1203
        %v1251 = vunpack.c.l.s4 1983009808
        %v1252 = vunpack.c.0.s8 %v1251
        %v1253 = vperm.slane %v1249, %v1252
        %v1254 = vrot.slane %v1241, 4
        %v1255 = vsel %vm294, %v1254, %v1235
        %v1256 = vrot.slane %v1235, 4
        %v1257 = vsel %vm294, %v1241, %v1256
        %v1259 = vunpack.c.l.s4 1934713408
        %v1260 = vunpack.c.0.s8 %v1259
        %v1261 = vperm.slane %v1255, %v1260
        %v1263 = vunpack.c.l.s4 1934713408
        %v1264 = vunpack.c.0.s8 %v1263
        %v1265 = vperm.slane %v1257, %v1264
        %v1266 = vrot.slane %v1253, 4
        %v1267 = vsel %vm294, %v1266, %v1247
        %v1268 = vrot.slane %v1247, 4
        %v1269 = vsel %vm294, %v1253, %v1268
        %v1271 = vunpack.c.l.s4 1934713408
        %v1272 = vunpack.c.0.s8 %v1271
        %v1273 = vperm.slane %v1267, %v1272
        %v1275 = vunpack.c.l.s4 1934713408
        %v1276 = vunpack.c.0.s8 %v1275
        %v1277 = vperm.slane %v1269, %v1276
        %v1278 = vrot.slane %v1273, 4
        %v1279 = vsel %vm294, %v1278, %v1261
        %v1280 = vrot.slane %v1261, 4
        %v1281 = vsel %vm294, %v1273, %v1280
        %v1282 = vrot.slane %v1277, 4
        %v1283 = vsel %vm294, %v1282, %v1265
        %v1284 = vrot.slane %v1265, 4
        %v1285 = vsel %vm294, %v1277, %v1284
        %v1286 = vrot.slane %v1208, 4
        %v1287 = vsel %vm294, %v1286, %v1206
        %v1289 = vunpack.c.l.s4 1983009808
        %v1290 = vunpack.c.0.s8 %v1289
        %v1291 = vperm.slane %v1287, %v1290
        %v1292 = vrot.slane %v1209, 4
        %v1293 = vsel %vm294, %v1292, %v1207
        %v1295 = vunpack.c.l.s4 1983009808
        %v1296 = vunpack.c.0.s8 %v1295
        %v1297 = vperm.slane %v1293, %v1296
        %v1298 = vrot.slane %v1212, 4
        %v1299 = vsel %vm294, %v1298, %v1210
        %v1301 = vunpack.c.l.s4 1983009808
        %v1302 = vunpack.c.0.s8 %v1301
        %v1303 = vperm.slane %v1299, %v1302
        %v1304 = vrot.slane %v1213, 4
        %v1305 = vsel %vm294, %v1304, %v1211
        %v1307 = vunpack.c.l.s4 1983009808
        %v1308 = vunpack.c.0.s8 %v1307
        %v1309 = vperm.slane %v1305, %v1308
        %v1310 = vrot.slane %v1297, 4
        %v1311 = vsel %vm294, %v1310, %v1291
        %v1312 = vrot.slane %v1291, 4
        %v1313 = vsel %vm294, %v1297, %v1312
        %v1315 = vunpack.c.l.s4 1934713408
        %v1316 = vunpack.c.0.s8 %v1315
        %v1317 = vperm.slane %v1311, %v1316
        %v1319 = vunpack.c.l.s4 1934713408
        %v1320 = vunpack.c.0.s8 %v1319
        %v1321 = vperm.slane %v1313, %v1320
        %v1322 = vrot.slane %v1309, 4
        %v1323 = vsel %vm294, %v1322, %v1303
        %v1324 = vrot.slane %v1303, 4
        %v1325 = vsel %vm294, %v1309, %v1324
        %v1327 = vunpack.c.l.s4 1934713408
        %v1328 = vunpack.c.0.s8 %v1327
        %v1329 = vperm.slane %v1323, %v1328
        %v1331 = vunpack.c.l.s4 1934713408
        %v1332 = vunpack.c.0.s8 %v1331
        %v1333 = vperm.slane %v1325, %v1332
        %v1334 = vrot.slane %v1329, 4
        %v1335 = vsel %vm294, %v1334, %v1317
        %v1336 = vrot.slane %v1317, 4
        %v1337 = vsel %vm294, %v1329, %v1336
        %v1338 = vrot.slane %v1333, 4
        %v1339 = vsel %vm294, %v1338, %v1321
        %v1340 = vrot.slane %v1321, 4
        %v1341 = vsel %vm294, %v1333, %v1340
        %v1342 = vrot.slane %v1216, 4
        %v1343 = vsel %vm294, %v1342, %v1214
        %v1345 = vunpack.c.l.s4 1983009808
        %v1346 = vunpack.c.0.s8 %v1345
        %v1347 = vperm.slane %v1343, %v1346
        %v1348 = vrot.slane %v1217, 4
        %v1349 = vsel %vm294, %v1348, %v1215
        %v1351 = vunpack.c.l.s4 1983009808
        %v1352 = vunpack.c.0.s8 %v1351
        %v1353 = vperm.slane %v1349, %v1352
        %v1354 = vrot.slane %v1220, 4
        %v1355 = vsel %vm294, %v1354, %v1218
        %v1357 = vunpack.c.l.s4 1983009808
        %v1358 = vunpack.c.0.s8 %v1357
        %v1359 = vperm.slane %v1355, %v1358
        %v1360 = vrot.slane %v1221, 4
        %v1361 = vsel %vm294, %v1360, %v1219
        %v1363 = vunpack.c.l.s4 1983009808
        %v1364 = vunpack.c.0.s8 %v1363
        %v1365 = vperm.slane %v1361, %v1364
        %v1366 = vrot.slane %v1353, 4
        %v1367 = vsel %vm294, %v1366, %v1347
        %v1368 = vrot.slane %v1347, 4
        %v1369 = vsel %vm294, %v1353, %v1368
        %v1371 = vunpack.c.l.s4 1934713408
        %v1372 = vunpack.c.0.s8 %v1371
        %v1373 = vperm.slane %v1367, %v1372
        %v1375 = vunpack.c.l.s4 1934713408
        %v1376 = vunpack.c.0.s8 %v1375
        %v1377 = vperm.slane %v1369, %v1376
        %v1378 = vrot.slane %v1365, 4
        %v1379 = vsel %vm294, %v1378, %v1359
        %v1380 = vrot.slane %v1359, 4
        %v1381 = vsel %vm294, %v1365, %v1380
        %v1383 = vunpack.c.l.s4 1934713408
        %v1384 = vunpack.c.0.s8 %v1383
        %v1385 = vperm.slane %v1379, %v1384
        %v1387 = vunpack.c.l.s4 1934713408
        %v1388 = vunpack.c.0.s8 %v1387
        %v1389 = vperm.slane %v1381, %v1388
        %v1390 = vrot.slane %v1385, 4
        %v1391 = vsel %vm294, %v1390, %v1373
        %v1392 = vrot.slane %v1373, 4
        %v1393 = vsel %vm294, %v1385, %v1392
        %v1394 = vrot.slane %v1389, 4
        %v1395 = vsel %vm294, %v1394, %v1377
        %v1396 = vrot.slane %v1377, 4
        %v1397 = vsel %vm294, %v1389, %v1396
        %v1398 = vrot.slane %v1224, 4
        %v1399 = vsel %vm294, %v1398, %v1222
        %v1401 = vunpack.c.l.s4 1983009808
        %v1402 = vunpack.c.0.s8 %v1401
        %v1403 = vperm.slane %v1399, %v1402
        %v1404 = vrot.slane %v1225, 4
        %v1405 = vsel %vm294, %v1404, %v1223
        %v1407 = vunpack.c.l.s4 1983009808
        %v1408 = vunpack.c.0.s8 %v1407
        %v1409 = vperm.slane %v1405, %v1408
        %v1410 = vrot.slane %v1228, 4
        %v1411 = vsel %vm294, %v1410, %v1226
        %v1413 = vunpack.c.l.s4 1983009808
        %v1414 = vunpack.c.0.s8 %v1413
        %v1415 = vperm.slane %v1411, %v1414
        %v1416 = vrot.slane %v1229, 4
        %v1417 = vsel %vm294, %v1416, %v1227
        %v1419 = vunpack.c.l.s4 1983009808
        %v1420 = vunpack.c.0.s8 %v1419
        %v1421 = vperm.slane %v1417, %v1420
        %v1422 = vrot.slane %v1409, 4
        %v1423 = vsel %vm294, %v1422, %v1403
        %v1424 = vrot.slane %v1403, 4
        %v1425 = vsel %vm294, %v1409, %v1424
        %v1427 = vunpack.c.l.s4 1934713408
        %v1428 = vunpack.c.0.s8 %v1427
        %v1429 = vperm.slane %v1423, %v1428
        %v1431 = vunpack.c.l.s4 1934713408
        %v1432 = vunpack.c.0.s8 %v1431
        %v1433 = vperm.slane %v1425, %v1432
        %v1434 = vrot.slane %v1421, 4
        %v1435 = vsel %vm294, %v1434, %v1415
        %v1436 = vrot.slane %v1415, 4
        %v1437 = vsel %vm294, %v1421, %v1436
        %v1439 = vunpack.c.l.s4 1934713408
        %v1440 = vunpack.c.0.s8 %v1439
        %v1441 = vperm.slane %v1435, %v1440
        %v1443 = vunpack.c.l.s4 1934713408
        %v1444 = vunpack.c.0.s8 %v1443
        %v1445 = vperm.slane %v1437, %v1444
        %v1446 = vrot.slane %v1441, 4
        %v1447 = vsel %vm294, %v1446, %v1429
        %v1448 = vrot.slane %v1429, 4
        %v1449 = vsel %vm294, %v1441, %v1448
        %v1450 = vrot.slane %v1445, 4
        %v1451 = vsel %vm294, %v1450, %v1433
        %v1452 = vrot.slane %v1433, 4
        %v1453 = vsel %vm294, %v1445, %v1452
        %1458 = vrot.lane.b32.xlu0 %v1281, 32
        %v1459 = vpop.permute.xlu0 %1458
        %1460 = vrot.lane.b32.xlu0 %v1337, 32
        %v1461 = vpop.permute.xlu0 %1460
        %1462 = vrot.lane.b32.xlu0 %v1393, 32
        %v1463 = vpop.permute.xlu0 %1462
        %1464 = vrot.lane.b32.xlu0 %v1449, 32
        %v1465 = vpop.permute.xlu0 %1464
        %1474 = vrot.lane.b32.xlu0 %v1283, 64
        %v1475 = vpop.permute.xlu0 %1474
        %1476 = vrot.lane.b32.xlu0 %v1339, 64
        %v1477 = vpop.permute.xlu0 %1476
        %1478 = vrot.lane.b32.xlu0 %v1395, 64
        %v1479 = vpop.permute.xlu0 %1478
        %1480 = vrot.lane.b32.xlu0 %v1451, 64
        %v1481 = vpop.permute.xlu0 %1480
        %1490 = vrot.lane.b32.xlu0 %v1285, 96
        %v1491 = vpop.permute.xlu0 %1490
        %1492 = vrot.lane.b32.xlu0 %v1341, 96
        %v1493 = vpop.permute.xlu0 %1492
        %1494 = vrot.lane.b32.xlu0 %v1397, 96
        %v1495 = vpop.permute.xlu0 %1494
        %1496 = vrot.lane.b32.xlu0 %v1453, 96
        %v1497 = vpop.permute.xlu0 %1496
        %vm1502 = vcmask 261120
        %v1503 = vsel %vm1502, %v1279, %v1459
        %v1504 = vsel %vm1502, %v1335, %v1461
        %v1505 = vsel %vm1502, %v1391, %v1463
        %v1506 = vsel %vm1502, %v1447, %v1465
        %v1507 = vsel %vm211, %v1503, %v1475
        %v1508 = vsel %vm211, %v1504, %v1477
        %v1509 = vsel %vm211, %v1505, %v1479
        %v1510 = vsel %vm211, %v1506, %v1481
        %vm1511 = vcmask 785408
        %v1512 = vsel %vm1511, %v1507, %v1491
        %v1513 = vsel %vm1511, %v1508, %v1493
        %v1514 = vsel %vm1511, %v1509, %v1495
        %v1515 = vsel %vm1511, %v1510, %v1497
        %v1516 = vld [vmem:[%s2] sm:$0x1]
        %v1518 = vperm.slane %v1516, 0
        %v1520 = vmul.f32 %v1512, %v1518
        %v1521 = vmul.f32 %v1513, %v1518
        %v1522 = vmul.f32 %v1514, %v1518
        %v1523 = vmul.f32 %v1515, %v1518
        %v1524 = vld [vmem:[%s3] sm:$0x1]
        %v1526 = vperm.slane %v1524, 0
        %v1528 = vadd.f32 %v1520, %v1526
        %v1529 = vadd.f32 %v1521, %v1526
        %v1530 = vadd.f32 %v1522, %v1526
        %v1531 = vadd.f32 %v1523, %v1526
        %1532 = vst.msk [vmem:[%s191] sm:$0xff] %vm211, %v1528
        %1533 = vst.msk [vmem:[%s191 + $0x10] sm:$0xff] %vm211, %v1529
        %1534 = vst.msk [vmem:[%s191 + $0x20] sm:$0xff] %vm211, %v1530
        %1535 = vst.msk [vmem:[%s191 + $0x30] sm:$0xff] %vm211, %v1531
        %1540 = vrot.lane.b32.xlu0 %v1528, 64
        %v1541 = vpop.permute.xlu0 %1540
        %1542 = vrot.lane.b32.xlu0 %v1529, 64
        %v1543 = vpop.permute.xlu0 %1542
        %1544 = vrot.lane.b32.xlu0 %v1530, 64
        %v1545 = vpop.permute.xlu0 %1544
        %1546 = vrot.lane.b32.xlu0 %v1531, 64
        %v1547 = vpop.permute.xlu0 %1546
        %s1552 = scalar_lea.vmem %s191, 8 [#allocation2]
        %1553 = vst.msk [vmem:[%s1552] sm:$0xff] %vm211, %v1541
        %1554 = vst.msk [vmem:[%s1552 + $0x10] sm:$0xff] %vm211, %v1543
        %1555 = vst.msk [vmem:[%s1552 + $0x20] sm:$0xff] %vm211, %v1545
        %1556 = vst.msk [vmem:[%s1552 + $0x30] sm:$0xff] %vm211, %v1547
        %s1557 = sand.u32 %s115, 1
        %s1558 = scalar_lea.sflag [#allocation3], %s1557
        %s1559 = sand.u32 %s115, 1
        %s1560 = smul.addr %s1559, 64
        %s1561 = scalar_lea.vmem [#allocation2], %s1560
        // Predicated region
        $region37: #{tpu_custom_call.1} parent=35 // pred_check
          %p1562 = pneg %p125
        $region38: #{tpu_custom_call.1} parent=35 // pred_check_branch
          %1564 = sbr.rel (%p1562) target = $region40
        $region39: #{tpu_custom_call.1} parent=35 // pred_region
          %s1565 = smul.u32 4, %s18
          %1567 = vsyncadd %s1558, 0
          %s1568 = smul.addr %s1565, 2
          %s1569 = smul.addr %s1568, 8
          %s1570 = scalar_lea.hbm %s4, %s1569
          %s1571 = sshll.u32 %s1561, 4
          %s1572 = int_to_ptr.vmem [resolvable:$true] %s1571
          %s1573 = sshll.u32 %s1570, 4
          %s1574 = int_to_ptr.hbm [resolvable:$true] %s1573
          %1579 = dma.vmem_to_hbm [thread:$0]  %s1572, 1024, %s1574, %s1558, 128, 128, 8
        $region40: #{tpu_custom_call.1} parent=35 // pred_fallthru
          _
      $region36: #{tpu_custom_call.1} parent=5 // pred_fallthru
        _
      %p1580 = scmp.le.s32.totalorder 2, %s13
      // Predicated region
      $region41: #{tpu_custom_call.1} parent=5 // pred_check
        %p1581 = pneg %p1580
      $region42: #{tpu_custom_call.1} parent=5 // pred_check_branch
        %1583 = sbr.rel (%p1581) target = $region44
      $region43: #{tpu_custom_call.1} parent=5 // pred_region
        %s1584 = ssub.s32 %s13, 2
        // Predicated region
        $region45: #{tpu_custom_call.1} parent=43 // pred_check
          %p1585 = pneg %p131
        $region46: #{tpu_custom_call.1} parent=43 // pred_check_branch
          %1587 = sbr.rel (%p1585) target = $region48
        $region47: #{tpu_custom_call.1} parent=43 // pred_region
          %s1588 = sand.u32 %s116, 1
          %s1589 = scalar_lea.sflag [#allocation3], %s1588
          %s1590 = sand.u32 %s116, 1
          %s1591 = smul.addr %s1590, 64
          %s1592 = scalar_lea.vmem [#allocation2], %s1591
          %1594 = dma.done %s1589, 1024
        $region48: #{tpu_custom_call.1} parent=43 // pred_fallthru
          _
      $region44: #{tpu_custom_call.1} parent=5 // pred_fallthru
        _
    $region6: #{tpu_custom_call.1} parent=1 // loop_footer
      %s17 = sadd.s32 1, %s13
    $region7: #{tpu_custom_call.1} parent=1 // loop_footer_branch
      %12 = sbr.rel target = $region3
    $region8: #{tpu_custom_call.1} parent=1 // loop_exit
      _
    %1595 = vsyncpa [#allocation3], 1
    %s1596 = scalar_lea.sflag [#allocation3], 1
    %1597 = vsyncpa %s1596, 1

</llo_original>
